<compile_context>
chip_gen: v7x
topology: tpu7x:2x2x1
jax: 0.10.0
libtpu: 0.0.40
codegen_flags: <defaults>
</compile_context>

<pallas_src>
import jax
import jax.numpy as jnp
from jax import lax
from jax.experimental import pallas as pl
from jax.experimental.pallas import tpu as pltpu

# ---------------- model hyper-params (small, synthetic) ----------------
B = 2          # batch
N = 16         # sequence length (tokens)
C = 32         # embedding dim
NUM_HEADS = 4
HEAD_DIM = C // NUM_HEADS
SCALE = HEAD_DIM ** (-0.5)
QKV_BIAS = False   # module default


def attention_kernel(x_ref, wqkv_ref, wproj_ref, bproj_ref, o_ref):
    """One grid step = one batch element (batch axis marked 'parallel' for v7x).

    x_ref:     (N, C)    tokens of this batch element (batch dim squeezed)
    wqkv_ref:  (C, 3C)   fused QKV weight, columns ordered (3, H, hd); the
                         attention scale is pre-folded into the Q columns.
    wproj_ref: (C, C)    output-projection weight, (in, out) layout.
    bproj_ref: (1, C)    output-projection bias.
    o_ref:     (N, C)    output tokens for this batch element.
    """
    n, c = x_ref.shape

    # Single fused QKV projection: one (N, C) @ (C, 3C) MXU matmul, 96-lane result.
    qkv = jnp.dot(x_ref[...], wqkv_ref[...],
                  preferred_element_type=jnp.float32)                      # (N, 3C)

    wproj = wproj_ref[...]
    acc = jnp.zeros((n, c), dtype=jnp.float32)

    # Static (unrolled) per-head loop; all slices below are static.
    for h in range(NUM_HEADS):
        lo = h * HEAD_DIM
        q_h = qkv[:, lo:lo + HEAD_DIM]                                     # (N, hd)
        k_h = qkv[:, c + lo:c + lo + HEAD_DIM]                             # (N, hd)
        v_h = qkv[:, 2 * c + lo:2 * c + lo + HEAD_DIM]                     # (N, hd)

        # Scores contract on the last dims -> no materialized transpose of K.
        s = lax.dot_general(q_h, k_h, (((1,), (1,)), ((), ())),
                            preferred_element_type=jnp.float32)            # (N, N)

        # Numerically-stable softmax; normalization deferred past the PV matmul.
        s = s - jnp.max(s, axis=-1, keepdims=True)
        p = jnp.exp(s)
        denom = jnp.sum(p, axis=-1, keepdims=True)                         # (N, 1)

        o_h = jnp.dot(p, v_h, preferred_element_type=jnp.float32)          # (N, hd)
        o_h = o_h * pl.reciprocal(denom, approx=True)                      # normalize after PV

        # Fused head-concat + output projection:
        #   proj(concat_h o_h) = sum_h o_h @ Wp[rows h*hd:(h+1)*hd]
        acc = acc + jnp.dot(o_h, wproj[lo:lo + HEAD_DIM, :],
                            preferred_element_type=jnp.float32)            # (N, C)

    o_ref[...] = (acc + bproj_ref[...]).astype(o_ref.dtype)


def prepare_params(w_qkv, w_proj, b_proj):
    """One-time parameter preparation (at init, NOT per forward call).

    Folds the attention scale into the Q columns (first C output columns) of
    the fused QKV weight; everything else is passed through unchanged.
    """
    col_scale = jnp.concatenate(
        [jnp.full((C,), SCALE, dtype=w_qkv.dtype),
         jnp.ones((2 * C,), dtype=w_qkv.dtype)])
    return w_qkv * col_scale[None, :], w_proj, b_proj


def attention_forward(x, w_qkv_scaled, w_proj, b_proj):
    """x: (B, N, C) float32 -> (B, N, C) float32."""
    Bb, Nn, Cc = x.shape
    return pl.pallas_call(
        attention_kernel,
        out_shape=jax.ShapeDtypeStruct((Bb, Nn, Cc), x.dtype),
        grid=(Bb,),
        in_specs=[
            pl.BlockSpec((pl.Squeezed(), Nn, Cc), lambda b: (b, 0, 0)),   # x, per-batch tile
            pl.BlockSpec((Cc, 3 * Cc), lambda b: (0, 0)),                 # w_qkv (resident)
            pl.BlockSpec((Cc, Cc), lambda b: (0, 0)),                     # w_proj (resident)
            pl.BlockSpec((1, Cc), lambda b: (0, 0)),                      # b_proj (resident)
        ],
        out_specs=pl.BlockSpec((pl.Squeezed(), Nn, Cc), lambda b: (b, 0, 0)),
        compiler_params=pltpu.CompilerParams(
            dimension_semantics=("parallel",)),
    )(x, w_qkv_scaled, w_proj, b_proj)


def attention_reference(x, w_qkv, w_proj, b_proj):
    """Pure-JAX reference mirroring the PyTorch forward (original params)."""
    Bb, Nn, Cc = x.shape
    qkv = jnp.einsum("bnc,cd->bnd", x, w_qkv)                      # (B, N, 3C)
    qkv = qkv.reshape(Bb, Nn, 3, NUM_HEADS, HEAD_DIM)
    qkv = jnp.transpose(qkv, (2, 0, 3, 1, 4))                      # (3, B, H, N, hd)
    q, k, v = qkv[0], qkv[1], qkv[2]
    attn = jnp.einsum("bhnd,bhmd->bhnm", q, k) * SCALE
    attn = jax.nn.softmax(attn, axis=-1)
    out = jnp.einsum("bhnm,bhmd->bhnd", attn, v)
    out = jnp.transpose(out, (0, 2, 1, 3)).reshape(Bb, Nn, Cc)
    return jnp.einsum("bnc,cd->bnd", out, w_proj) + b_proj


if __name__ == "__main__":
    key = jax.random.PRNGKey(0)
    kx, kq, kp, kb = jax.random.split(key, 4)

    x = jax.random.normal(kx, (B, N, C), dtype=jnp.float32)
    # Deterministic synthetic parameters (nn.Linear shapes, stored (in, out)).
    w_qkv = jax.random.normal(kq, (C, 3 * C), dtype=jnp.float32) * 0.05
    w_proj = jax.random.normal(kp, (C, C), dtype=jnp.float32) * 0.05
    b_proj = jax.random.normal(kb, (1, C), dtype=jnp.float32) * 0.05
    # (qkv_bias=False -> no QKV bias, matching module default)

    params = prepare_params(w_qkv, w_proj, b_proj)     # once, at init time
    out = attention_forward(x, *params)
    out = jax.block_until_ready(out)

    ref = attention_reference(x, w_qkv, w_proj, b_proj)
    assert out.shape == (B, N, C)
    # tolerance relaxed vs 1e-4 because of pl.reciprocal(approx=True)
    assert jnp.allclose(out, ref, atol=2e-3, rtol=2e-3), "mismatch vs reference"

    print("KERNEL_OK")
</pallas_src>

<mosaic_0001>
module attributes {stable_mosaic.version = 11 : i64} {
  func.func @attention_kernel(%arg0: i32, %arg1: memref<1x16x32xf32, #tpu.memory_space<vmem>>, %arg2: memref<32x96xf32, #tpu.memory_space<vmem>>, %arg3: memref<32x32xf32, #tpu.memory_space<vmem>>, %arg4: memref<1x32xf32, #tpu.memory_space<vmem>>, %arg5: memref<1x16x32xf32, #tpu.memory_space<vmem>>) attributes {dimension_semantics = [#tpu.dimension_semantics<parallel>], iteration_bounds = array<i64: 2>, scalar_prefetch = 0 : i64, scratch_operands = 0 : i64, tpu.core_type = #tpu.core_type<tc>, window_params = [{transform_indices = @transform_0, window_bounds = array<i64: 1, 16, 32>}, {pipeline_mode = #tpu.pipeline_mode<synchronous>, transform_indices = @transform_1, window_bounds = array<i64: 32, 96>}, {pipeline_mode = #tpu.pipeline_mode<synchronous>, transform_indices = @transform_2, window_bounds = array<i64: 32, 32>}, {pipeline_mode = #tpu.pipeline_mode<synchronous>, transform_indices = @transform_3, window_bounds = array<i64: 1, 32>}, {transform_indices = @transform_4, window_bounds = array<i64: 1, 16, 32>}]} {
    %c0 = arith.constant 0 : index
    %c0_0 = arith.constant 0 : index
    %c0_1 = arith.constant 0 : index
    %0 = vector.load %arg1[%c0, %c0_0, %c0_1] : memref<1x16x32xf32, #tpu.memory_space<vmem>>, vector<1x16x32xf32>
    %1 = vector.shape_cast %0 : vector<1x16x32xf32> to vector<16x32xf32>
    %c0_2 = arith.constant 0 : index
    %c0_3 = arith.constant 0 : index
    %2 = vector.load %arg2[%c0_2, %c0_3] : memref<32x96xf32, #tpu.memory_space<vmem>>, vector<32x96xf32>
    %cst = arith.constant dense<0.000000e+00> : vector<16x96xf32>
    %3 = tpu.matmul %1, %2, %cst {dimension_numbers = #tpu.dot_dimension_numbers<[1], [0], [0], [1], [0, 0, 1, 1], [], []>} : vector<16x32xf32>, vector<32x96xf32>, vector<16x96xf32> -> vector<16x96xf32>
    %c0_4 = arith.constant 0 : index
    %c0_5 = arith.constant 0 : index
    %4 = vector.load %arg3[%c0_4, %c0_5] : memref<32x32xf32, #tpu.memory_space<vmem>>, vector<32x32xf32>
    %cst_6 = arith.constant 0.000000e+00 : f32
    %5 = vector.broadcast %cst_6 : f32 to vector<16x32xf32>
    %6 = vector.extract_strided_slice %3 {offsets = [0, 0], sizes = [16, 8], strides = [1, 1]} : vector<16x96xf32> to vector<16x8xf32>
    %7 = vector.extract_strided_slice %3 {offsets = [0, 32], sizes = [16, 8], strides = [1, 1]} : vector<16x96xf32> to vector<16x8xf32>
    %8 = vector.extract_strided_slice %3 {offsets = [0, 64], sizes = [16, 8], strides = [1, 1]} : vector<16x96xf32> to vector<16x8xf32>
    %cst_7 = arith.constant dense<0.000000e+00> : vector<16x16xf32>
    %9 = tpu.matmul %6, %7, %cst_7 {dimension_numbers = #tpu.dot_dimension_numbers<[1], [1], [0], [0], [0, 0, 1, 0], [], []>} : vector<16x8xf32>, vector<16x8xf32>, vector<16x16xf32> -> vector<16x16xf32>
    %cst_8 = arith.constant dense<0xFF800000> : vector<16xf32>
    %10 = vector.multi_reduction <maximumf>, %9, %cst_8 [1] : vector<16x16xf32> to vector<16xf32>
    %11 = vector.shape_cast %10 : vector<16xf32> to vector<16x1xf32>
    %12 = vector.broadcast %11 : vector<16x1xf32> to vector<16x16xf32>
    %13 = arith.subf %9, %12 : vector<16x16xf32>
    %14 = math.exp %13 : vector<16x16xf32>
    %cst_9 = arith.constant dense<0.000000e+00> : vector<16xf32>
    %15 = vector.multi_reduction <add>, %14, %cst_9 [1] : vector<16x16xf32> to vector<16xf32>
    %16 = vector.shape_cast %15 : vector<16xf32> to vector<16x1xf32>
    %cst_10 = arith.constant dense<0.000000e+00> : vector<16x8xf32>
    %17 = tpu.matmul %14, %8, %cst_10 {dimension_numbers = #tpu.dot_dimension_numbers<[1], [0], [0], [1], [0, 0, 1, 1], [], []>} : vector<16x16xf32>, vector<16x8xf32>, vector<16x8xf32> -> vector<16x8xf32>
    %18 = tpu.reciprocal %16 {approx = true} : vector<16x1xf32> -> vector<16x1xf32>
    %19 = vector.broadcast %18 : vector<16x1xf32> to vector<16x8xf32>
    %20 = arith.mulf %17, %19 : vector<16x8xf32>
    %21 = vector.extract_strided_slice %4 {offsets = [0, 0], sizes = [8, 32], strides = [1, 1]} : vector<32x32xf32> to vector<8x32xf32>
    %cst_11 = arith.constant dense<0.000000e+00> : vector<16x32xf32>
    %22 = tpu.matmul %20, %21, %cst_11 {dimension_numbers = #tpu.dot_dimension_numbers<[1], [0], [0], [1], [0, 0, 1, 1], [], []>} : vector<16x8xf32>, vector<8x32xf32>, vector<16x32xf32> -> vector<16x32xf32>
    %23 = arith.addf %5, %22 : vector<16x32xf32>
    %24 = vector.extract_strided_slice %3 {offsets = [0, 8], sizes = [16, 8], strides = [1, 1]} : vector<16x96xf32> to vector<16x8xf32>
    %25 = vector.extract_strided_slice %3 {offsets = [0, 40], sizes = [16, 8], strides = [1, 1]} : vector<16x96xf32> to vector<16x8xf32>
    %26 = vector.extract_strided_slice %3 {offsets = [0, 72], sizes = [16, 8], strides = [1, 1]} : vector<16x96xf32> to vector<16x8xf32>
    %cst_12 = arith.constant dense<0.000000e+00> : vector<16x16xf32>
    %27 = tpu.matmul %24, %25, %cst_12 {dimension_numbers = #tpu.dot_dimension_numbers<[1], [1], [0], [0], [0, 0, 1, 0], [], []>} : vector<16x8xf32>, vector<16x8xf32>, vector<16x16xf32> -> vector<16x16xf32>
    %cst_13 = arith.constant dense<0xFF800000> : vector<16xf32>
    %28 = vector.multi_reduction <maximumf>, %27, %cst_13 [1] : vector<16x16xf32> to vector<16xf32>
    %29 = vector.shape_cast %28 : vector<16xf32> to vector<16x1xf32>
    %30 = vector.broadcast %29 : vector<16x1xf32> to vector<16x16xf32>
    %31 = arith.subf %27, %30 : vector<16x16xf32>
    %32 = math.exp %31 : vector<16x16xf32>
    %cst_14 = arith.constant dense<0.000000e+00> : vector<16xf32>
    %33 = vector.multi_reduction <add>, %32, %cst_14 [1] : vector<16x16xf32> to vector<16xf32>
    %34 = vector.shape_cast %33 : vector<16xf32> to vector<16x1xf32>
    %cst_15 = arith.constant dense<0.000000e+00> : vector<16x8xf32>
    %35 = tpu.matmul %32, %26, %cst_15 {dimension_numbers = #tpu.dot_dimension_numbers<[1], [0], [0], [1], [0, 0, 1, 1], [], []>} : vector<16x16xf32>, vector<16x8xf32>, vector<16x8xf32> -> vector<16x8xf32>
    %36 = tpu.reciprocal %34 {approx = true} : vector<16x1xf32> -> vector<16x1xf32>
    %37 = vector.broadcast %36 : vector<16x1xf32> to vector<16x8xf32>
    %38 = arith.mulf %35, %37 : vector<16x8xf32>
    %39 = vector.extract_strided_slice %4 {offsets = [8, 0], sizes = [8, 32], strides = [1, 1]} : vector<32x32xf32> to vector<8x32xf32>
    %cst_16 = arith.constant dense<0.000000e+00> : vector<16x32xf32>
    %40 = tpu.matmul %38, %39, %cst_16 {dimension_numbers = #tpu.dot_dimension_numbers<[1], [0], [0], [1], [0, 0, 1, 1], [], []>} : vector<16x8xf32>, vector<8x32xf32>, vector<16x32xf32> -> vector<16x32xf32>
    %41 = arith.addf %23, %40 : vector<16x32xf32>
    %42 = vector.extract_strided_slice %3 {offsets = [0, 16], sizes = [16, 8], strides = [1, 1]} : vector<16x96xf32> to vector<16x8xf32>
    %43 = vector.extract_strided_slice %3 {offsets = [0, 48], sizes = [16, 8], strides = [1, 1]} : vector<16x96xf32> to vector<16x8xf32>
    %44 = vector.extract_strided_slice %3 {offsets = [0, 80], sizes = [16, 8], strides = [1, 1]} : vector<16x96xf32> to vector<16x8xf32>
    %cst_17 = arith.constant dense<0.000000e+00> : vector<16x16xf32>
    %45 = tpu.matmul %42, %43, %cst_17 {dimension_numbers = #tpu.dot_dimension_numbers<[1], [1], [0], [0], [0, 0, 1, 0], [], []>} : vector<16x8xf32>, vector<16x8xf32>, vector<16x16xf32> -> vector<16x16xf32>
    %cst_18 = arith.constant dense<0xFF800000> : vector<16xf32>
    %46 = vector.multi_reduction <maximumf>, %45, %cst_18 [1] : vector<16x16xf32> to vector<16xf32>
    %47 = vector.shape_cast %46 : vector<16xf32> to vector<16x1xf32>
    %48 = vector.broadcast %47 : vector<16x1xf32> to vector<16x16xf32>
    %49 = arith.subf %45, %48 : vector<16x16xf32>
    %50 = math.exp %49 : vector<16x16xf32>
    %cst_19 = arith.constant dense<0.000000e+00> : vector<16xf32>
    %51 = vector.multi_reduction <add>, %50, %cst_19 [1] : vector<16x16xf32> to vector<16xf32>
    %52 = vector.shape_cast %51 : vector<16xf32> to vector<16x1xf32>
    %cst_20 = arith.constant dense<0.000000e+00> : vector<16x8xf32>
    %53 = tpu.matmul %50, %44, %cst_20 {dimension_numbers = #tpu.dot_dimension_numbers<[1], [0], [0], [1], [0, 0, 1, 1], [], []>} : vector<16x16xf32>, vector<16x8xf32>, vector<16x8xf32> -> vector<16x8xf32>
    %54 = tpu.reciprocal %52 {approx = true} : vector<16x1xf32> -> vector<16x1xf32>
    %55 = vector.broadcast %54 : vector<16x1xf32> to vector<16x8xf32>
    %56 = arith.mulf %53, %55 : vector<16x8xf32>
    %57 = vector.extract_strided_slice %4 {offsets = [16, 0], sizes = [8, 32], strides = [1, 1]} : vector<32x32xf32> to vector<8x32xf32>
    %cst_21 = arith.constant dense<0.000000e+00> : vector<16x32xf32>
    %58 = tpu.matmul %56, %57, %cst_21 {dimension_numbers = #tpu.dot_dimension_numbers<[1], [0], [0], [1], [0, 0, 1, 1], [], []>} : vector<16x8xf32>, vector<8x32xf32>, vector<16x32xf32> -> vector<16x32xf32>
    %59 = arith.addf %41, %58 : vector<16x32xf32>
    %60 = vector.extract_strided_slice %3 {offsets = [0, 24], sizes = [16, 8], strides = [1, 1]} : vector<16x96xf32> to vector<16x8xf32>
    %61 = vector.extract_strided_slice %3 {offsets = [0, 56], sizes = [16, 8], strides = [1, 1]} : vector<16x96xf32> to vector<16x8xf32>
    %62 = vector.extract_strided_slice %3 {offsets = [0, 88], sizes = [16, 8], strides = [1, 1]} : vector<16x96xf32> to vector<16x8xf32>
    %cst_22 = arith.constant dense<0.000000e+00> : vector<16x16xf32>
    %63 = tpu.matmul %60, %61, %cst_22 {dimension_numbers = #tpu.dot_dimension_numbers<[1], [1], [0], [0], [0, 0, 1, 0], [], []>} : vector<16x8xf32>, vector<16x8xf32>, vector<16x16xf32> -> vector<16x16xf32>
    %cst_23 = arith.constant dense<0xFF800000> : vector<16xf32>
    %64 = vector.multi_reduction <maximumf>, %63, %cst_23 [1] : vector<16x16xf32> to vector<16xf32>
    %65 = vector.shape_cast %64 : vector<16xf32> to vector<16x1xf32>
    %66 = vector.broadcast %65 : vector<16x1xf32> to vector<16x16xf32>
    %67 = arith.subf %63, %66 : vector<16x16xf32>
    %68 = math.exp %67 : vector<16x16xf32>
    %cst_24 = arith.constant dense<0.000000e+00> : vector<16xf32>
    %69 = vector.multi_reduction <add>, %68, %cst_24 [1] : vector<16x16xf32> to vector<16xf32>
    %70 = vector.shape_cast %69 : vector<16xf32> to vector<16x1xf32>
    %cst_25 = arith.constant dense<0.000000e+00> : vector<16x8xf32>
    %71 = tpu.matmul %68, %62, %cst_25 {dimension_numbers = #tpu.dot_dimension_numbers<[1], [0], [0], [1], [0, 0, 1, 1], [], []>} : vector<16x16xf32>, vector<16x8xf32>, vector<16x8xf32> -> vector<16x8xf32>
    %72 = tpu.reciprocal %70 {approx = true} : vector<16x1xf32> -> vector<16x1xf32>
    %73 = vector.broadcast %72 : vector<16x1xf32> to vector<16x8xf32>
    %74 = arith.mulf %71, %73 : vector<16x8xf32>
    %75 = vector.extract_strided_slice %4 {offsets = [24, 0], sizes = [8, 32], strides = [1, 1]} : vector<32x32xf32> to vector<8x32xf32>
    %cst_26 = arith.constant dense<0.000000e+00> : vector<16x32xf32>
    %76 = tpu.matmul %74, %75, %cst_26 {dimension_numbers = #tpu.dot_dimension_numbers<[1], [0], [0], [1], [0, 0, 1, 1], [], []>} : vector<16x8xf32>, vector<8x32xf32>, vector<16x32xf32> -> vector<16x32xf32>
    %77 = arith.addf %59, %76 : vector<16x32xf32>
    %c0_27 = arith.constant 0 : index
    %c0_28 = arith.constant 0 : index
    %78 = vector.load %arg4[%c0_27, %c0_28] : memref<1x32xf32, #tpu.memory_space<vmem>>, vector<1x32xf32>
    %79 = vector.broadcast %78 : vector<1x32xf32> to vector<16x32xf32>
    %80 = arith.addf %77, %79 : vector<16x32xf32>
    %c0_29 = arith.constant 0 : index
    %c0_30 = arith.constant 0 : index
    %c0_31 = arith.constant 0 : index
    %81 = vector.load %arg5[%c0_29, %c0_30, %c0_31] : memref<1x16x32xf32, #tpu.memory_space<vmem>>, vector<1x16x32xf32>
    %82 = vector.shape_cast %81 : vector<1x16x32xf32> to vector<16x32xf32>
    %83 = vector.shape_cast %80 : vector<16x32xf32> to vector<1x16x32xf32>
    tpu.vector_store %arg5[%c0_29, %c0_30, %c0_31], %83 {strides = array<i32>} : memref<1x16x32xf32, #tpu.memory_space<vmem>>, vector<1x16x32xf32>,
    return
  }
  func.func @transform_0(%arg0: i32) -> (i32, i32, i32) {
    %c0_i32 = arith.constant 0 : i32
    %c0_i32_0 = arith.constant 0 : i32
    %c0_i32_1 = arith.constant 0 : i32
    return %arg0, %c0_i32, %c0_i32_0 : i32, i32, i32
  }
  func.func @transform_1(%arg0: i32) -> (i32, i32) {
    %c0_i32 = arith.constant 0 : i32
    %c0_i32_0 = arith.constant 0 : i32
    %c0_i32_1 = arith.constant 0 : i32
    return %c0_i32, %c0_i32_0 : i32, i32
  }
  func.func @transform_2(%arg0: i32) -> (i32, i32) {
    %c0_i32 = arith.constant 0 : i32
    %c0_i32_0 = arith.constant 0 : i32
    %c0_i32_1 = arith.constant 0 : i32
    return %c0_i32, %c0_i32_0 : i32, i32
  }
  func.func @transform_3(%arg0: i32) -> (i32, i32) {
    %c0_i32 = arith.constant 0 : i32
    %c0_i32_0 = arith.constant 0 : i32
    %c0_i32_1 = arith.constant 0 : i32
    return %c0_i32, %c0_i32_0 : i32, i32
  }
  func.func @transform_4(%arg0: i32) -> (i32, i32, i32) {
    %c0_i32 = arith.constant 0 : i32
    %c0_i32_0 = arith.constant 0 : i32
    %c0_i32_1 = arith.constant 0 : i32
    return %arg0, %c0_i32, %c0_i32_0 : i32, i32, i32
  }
}

</mosaic_0001>

<llo_original>
// kernel: tpu_custom_call.1
$region0: #{tpu_custom_call.1}
  #allocation0 [shape = 'u32[]', space=smem, size = 0x4, offset = 0x4, fixed_abs, tag = 'smem constant byte address 0x4 - core index']
  #allocation1 [shape = 'u32[144,128]{1,0:T(1,128)}', space=vmem, size = 0x12000, scoped, tag = 'internal scratch']
  %s0 = inlined_call_operand.hbm [shape: f32[2,16,32], index: 0, kind: input, shape index: {}]
  %s1 = inlined_call_operand.hbm [shape: f32[32,96], index: 1, kind: input, shape index: {}]
  %s2 = inlined_call_operand.hbm [shape: f32[32,32], index: 2, kind: input, shape index: {}]
  %s3 = inlined_call_operand.vmem [shape: f32[1,32], index: 3, kind: input, shape index: {}]
  %s4 = inlined_call_operand.hbm [shape: f32[2,16,32], index: 4, kind: output, shape index: {}]
  %s5 = sld [smem:[#allocation0]]
  $region61: #{tpu_custom_call.1} parent=0
    _
  %s7 = ssub.s32 1, %s5
  %s8 = scalar_select 0, %s7, %s5
  $region1: #{tpu_custom_call.1} parent=0
    #allocation2 [shape = 'u8[16384]{0}', space=vmem, size = 0x4000, scoped, tag = 'input window, operand 0']
    #allocation3 [shape = 's32[2]{0}', space=sflag, size = 0x8, scoped, tag = 'scoped memory for tpu_custom_call.1']
    #allocation4 [shape = 's32[2]{0}', space=sflag, size = 0x8, scoped, tag = 'scoped memory for tpu_custom_call.1']
    #allocation5 [shape = 'u8[16384]{0}', space=vmem, size = 0x4000, scoped, tag = 'input window, operand 1, single buffered']
    #allocation6 [shape = 's32[1]{0}', space=sflag, size = 0x4, scoped, tag = 'scoped memory for tpu_custom_call.1']
    #allocation7 [shape = 'u8[16384]{0}', space=vmem, size = 0x4000, scoped, tag = 'input window, operand 2, single buffered']
    #allocation8 [shape = 'u8[16384]{0}', space=vmem, size = 0x4000, scoped, tag = 'output window, operand 0']
    %9 = vsyncpa [#allocation3], 0
    %s10 = scalar_lea.sflag [#allocation3], 1
    %11 = vsyncpa %s10, 0
    %12 = vsyncpa [#allocation6], 0
    %13 = vsyncpa [#allocation4], 0
    %s14 = scalar_lea.sflag [#allocation4], 1
    %15 = vsyncpa %s14, 0
    loop: start=0, step=1, limit=4
    $region2: #{tpu_custom_call.1} parent=1 // loop_pre_header
      _
    $region3: #{tpu_custom_call.1} parent=1 // loop_header
      %s17 = sphi 0, %s21
      %p18 = scmp.ge.s32.totalorder %s17, 4
      %s27 = sphi 0, %s29
      %s30 = sphi 0, %s27
      %s31 = sphi 0, %s30
      %s47 = sphi 0, %s31
      %s51 = sphi 0, %s51
      %s53 = sphi 0, %s51
      %s54 = sphi 0, %s53
      %s68 = sphi 0, %s54
      %s72 = sphi 0, %s72
      %s74 = sphi 0, %s72
      %s75 = sphi 0, %s74
      %s89 = sphi 0, %s75
      %s93 = sphi 0, %s93
      %s95 = sphi 0, %s93
      %s96 = sphi 0, %s95
      %s110 = sphi 0, %s96
      %s116 = sphi 0, %s118
      %s119 = sphi 0, %s116
      %s120 = sphi 0, %s119
      %s136 = sphi 0, %s120
    $region4: #{tpu_custom_call.1} parent=1 // loop_header_branch
      %20 = sbr.rel (%p18) target = $region8
    $region5: #{tpu_custom_call.1} parent=1 // loop_body
      %s22 = ssub.s32 %s17, 1
      %s23 = ssub.s32 %s17, 2
      %s24 = sadd.s32 %s17, 1
      %s25 = ssub.s32 %s17, %s24
      %p26 = scmp.eq.s32.totalorder %s25, 0
      %s28 = sadd.s32 %s27, 1
      %s29 = scalar_select %p26, %s27, %s28
      %p32 = pneg %p26
      %p33 = scmp.eq.s32.totalorder %s17, 1
      %p34 = por %p32, %p33
      %p35 = scmp.ne.s32.totalorder %s27, %s30
      %p36 = scmp.eq.s32.totalorder %s17, 0
      %p37 = por %p35, %p36
      %p38 = scmp.ne.s32.totalorder %s27, %s30
      %p39 = scmp.eq.s32.totalorder %s22, 1
      %p40 = por %p38, %p39
      %p41 = scmp.ne.s32.totalorder %s30, %s31
      %p42 = scmp.eq.s32.totalorder %s22, 0
      %p43 = por %p41, %p42
      %p44 = scmp.ne.s32.totalorder %s30, %s31
      %p45 = scmp.eq.s32.totalorder %s23, 1
      %p46 = por %p44, %p45
      %p48 = scmp.ne.s32.totalorder %s31, %s47
      %p49 = scmp.eq.s32.totalorder %s23, 0
      %p50 = por %p48, %p49
      %s52 = sadd.s32 %s51, 1
      %p55 = scmp.eq.s32.totalorder %s17, 1
      %p56 = scmp.ne.s32.totalorder %s51, %s53
      %p57 = scmp.eq.s32.totalorder %s17, 0
      %p58 = por %p56, %p57
      %p59 = scmp.ne.s32.totalorder %s51, %s53
      %p60 = scmp.eq.s32.totalorder %s22, 1
      %p61 = por %p59, %p60
      %p62 = scmp.ne.s32.totalorder %s53, %s54
      %p63 = scmp.eq.s32.totalorder %s22, 0
      %p64 = por %p62, %p63
      %p65 = scmp.ne.s32.totalorder %s53, %s54
      %p66 = scmp.eq.s32.totalorder %s23, 1
      %p67 = por %p65, %p66
      %p69 = scmp.ne.s32.totalorder %s54, %s68
      %p70 = scmp.eq.s32.totalorder %s23, 0
      %p71 = por %p69, %p70
      %s73 = sadd.s32 %s72, 1
      %p76 = scmp.eq.s32.totalorder %s17, 1
      %p77 = scmp.ne.s32.totalorder %s72, %s74
      %p78 = scmp.eq.s32.totalorder %s17, 0
      %p79 = por %p77, %p78
      %p80 = scmp.ne.s32.totalorder %s72, %s74
      %p81 = scmp.eq.s32.totalorder %s22, 1
      %p82 = por %p80, %p81
      %p83 = scmp.ne.s32.totalorder %s74, %s75
      %p84 = scmp.eq.s32.totalorder %s22, 0
      %p85 = por %p83, %p84
      %p86 = scmp.ne.s32.totalorder %s74, %s75
      %p87 = scmp.eq.s32.totalorder %s23, 1
      %p88 = por %p86, %p87
      %p90 = scmp.ne.s32.totalorder %s75, %s89
      %p91 = scmp.eq.s32.totalorder %s23, 0
      %p92 = por %p90, %p91
      %s94 = sadd.s32 %s93, 1
      %p97 = scmp.eq.s32.totalorder %s17, 1
      %p98 = scmp.ne.s32.totalorder %s93, %s95
      %p99 = scmp.eq.s32.totalorder %s17, 0
      %p100 = por %p98, %p99
      %p101 = scmp.ne.s32.totalorder %s93, %s95
      %p102 = scmp.eq.s32.totalorder %s22, 1
      %p103 = por %p101, %p102
      %p104 = scmp.ne.s32.totalorder %s95, %s96
      %p105 = scmp.eq.s32.totalorder %s22, 0
      %p106 = por %p104, %p105
      %p107 = scmp.ne.s32.totalorder %s95, %s96
      %p108 = scmp.eq.s32.totalorder %s23, 1
      %p109 = por %p107, %p108
      %p111 = scmp.ne.s32.totalorder %s96, %s110
      %p112 = scmp.eq.s32.totalorder %s23, 0
      %p113 = por %p111, %p112
      %s114 = ssub.s32 %s17, %s24
      %p115 = scmp.eq.s32.totalorder %s114, 0
      %s117 = sadd.s32 %s116, 1
      %s118 = scalar_select %p115, %s116, %s117
      %p121 = pneg %p115
      %p122 = scmp.eq.s32.totalorder %s17, 1
      %p123 = por %p121, %p122
      %p124 = scmp.ne.s32.totalorder %s116, %s119
      %p125 = scmp.eq.s32.totalorder %s17, 0
      %p126 = por %p124, %p125
      %p127 = scmp.ne.s32.totalorder %s116, %s119
      %p128 = scmp.eq.s32.totalorder %s22, 1
      %p129 = por %p127, %p128
      %p130 = scmp.ne.s32.totalorder %s119, %s120
      %p131 = scmp.eq.s32.totalorder %s22, 0
      %p132 = por %p130, %p131
      %p133 = scmp.ne.s32.totalorder %s119, %s120
      %p134 = scmp.eq.s32.totalorder %s23, 1
      %p135 = por %p133, %p134
      %p137 = scmp.ne.s32.totalorder %s120, %s136
      %p138 = scmp.eq.s32.totalorder %s23, 0
      %p139 = por %p137, %p138
      %p140 = scmp.le.s32.totalorder 1, %s17
      %p141 = scmp.lt.s32.totalorder %s17, 3
      %p142 = pnand %p140, %p141
      %p143 = pneg %p142
      // Predicated region
      $region9: #{tpu_custom_call.1} parent=5 // pred_check
        _
      $region10: #{tpu_custom_call.1} parent=5 // pred_check_branch
        %145 = sbr.rel (%p142) target = $region12
      $region11: #{tpu_custom_call.1} parent=5 // pred_region
        %s146 = ssub.s32 %s17, 1
        // Predicated region
        $region13: #{tpu_custom_call.1} parent=11 // pred_check
          %p147 = pneg %p64
        $region14: #{tpu_custom_call.1} parent=11 // pred_check_branch
          %149 = sbr.rel (%p147) target = $region16
        $region15: #{tpu_custom_call.1} parent=11 // pred_region
          %s151 = ssub.s32 512, 512
          %152 = vsyncadd [#allocation6], %s151
          %s153 = sshll.u32 [#allocation5], 4
          %s154 = int_to_ptr.vmem [resolvable:$true] %s153
          %159 = dma.hbm_to_vmem [thread:$0]  %s1, 512, %s154, [#allocation6], 128, 128, 8
        $region16: #{tpu_custom_call.1} parent=11 // pred_fallthru
          _
        // Predicated region
        $region17: #{tpu_custom_call.1} parent=11 // pred_check
          %p160 = pneg %p85
        $region18: #{tpu_custom_call.1} parent=11 // pred_check_branch
          %162 = sbr.rel (%p160) target = $region20
        $region19: #{tpu_custom_call.1} parent=11 // pred_region
          %s164 = ssub.s32 512, 512
          %165 = vsyncadd [#allocation6], %s164
          %s166 = sshll.u32 [#allocation7], 4
          %s167 = int_to_ptr.vmem [resolvable:$true] %s166
          %172 = dma.hbm_to_vmem [thread:$0]  %s2, 512, %s167, [#allocation6], 128, 128, 8
        $region20: #{tpu_custom_call.1} parent=11 // pred_fallthru
          _
        // Predicated region
        $region21: #{tpu_custom_call.1} parent=11 // pred_check
          %p173 = pneg %p106
        $region22: #{tpu_custom_call.1} parent=11 // pred_check_branch
          %175 = sbr.rel (%p173) target = $region24
        $region23: #{tpu_custom_call.1} parent=11 // pred_region
          _
        $region24: #{tpu_custom_call.1} parent=11 // pred_fallthru
          _
      $region12: #{tpu_custom_call.1} parent=5 // pred_fallthru
        _
      %p176 = scmp.lt.s32.totalorder %s17, 2
      // Predicated region
      $region25: #{tpu_custom_call.1} parent=5 // pred_check
        %p177 = pneg %p176
      $region26: #{tpu_custom_call.1} parent=5 // pred_check_branch
        %179 = sbr.rel (%p177) target = $region28
      $region27: #{tpu_custom_call.1} parent=5 // pred_region
        // Predicated region
        $region29: #{tpu_custom_call.1} parent=27 // pred_check
          %p180 = pneg %p37
        $region30: #{tpu_custom_call.1} parent=27 // pred_check_branch
          %182 = sbr.rel (%p180) target = $region32
        $region31: #{tpu_custom_call.1} parent=27 // pred_region
          %s183 = sand.u32 %s27, 1
          %s184 = scalar_lea.sflag [#allocation3], %s183
          %s185 = sand.u32 %s27, 1
          %s186 = smul.addr %s185, 16
          %s187 = scalar_lea.vmem [#allocation2], %s186
          %s189 = ssub.s32 256, 256
          %190 = vsyncadd %s184, %s189
          %s191 = smul.addr %s17, 2
          %s192 = smul.addr %s191, 128
          %s193 = scalar_lea.hbm %s0, %s192
          %s194 = sshll.u32 %s187, 4
          %s195 = int_to_ptr.vmem [resolvable:$true] %s194
          %200 = dma.hbm_to_vmem [thread:$0]  %s193, 256, %s195, %s184, 128, 128, 8
        $region32: #{tpu_custom_call.1} parent=27 // pred_fallthru
          _
      $region28: #{tpu_custom_call.1} parent=5 // pred_fallthru
        _
      %p201 = scmp.le.s32.totalorder 1, %s17
      %p202 = scmp.lt.s32.totalorder %s17, 3
      %p203 = pnand %p201, %p202
      %p204 = pneg %p203
      // Predicated region
      $region33: #{tpu_custom_call.1} parent=5 // pred_check
        _
      $region34: #{tpu_custom_call.1} parent=5 // pred_check_branch
        %206 = sbr.rel (%p203) target = $region36
      $region35: #{tpu_custom_call.1} parent=5 // pred_region
        %s207 = ssub.s32 %s17, 1
        %s208 = sand.u32 %s30, 1
        %s209 = scalar_lea.sflag [#allocation3], %s208
        %s210 = sand.u32 %s30, 1
        %s211 = smul.addr %s210, 16
        %s212 = scalar_lea.vmem [#allocation2], %s211
        // Predicated region
        $region37: #{tpu_custom_call.1} parent=35 // pred_check
          %p213 = pneg %p43
        $region38: #{tpu_custom_call.1} parent=35 // pred_check_branch
          %215 = sbr.rel (%p213) target = $region40
        $region39: #{tpu_custom_call.1} parent=35 // pred_region
          %216 = dma.done %s209, 256
        $region40: #{tpu_custom_call.1} parent=35 // pred_fallthru
          _
        // Predicated region
        $region41: #{tpu_custom_call.1} parent=35 // pred_check
          %p217 = pneg %p64
        $region42: #{tpu_custom_call.1} parent=35 // pred_check_branch
          %219 = sbr.rel (%p217) target = $region44
        $region43: #{tpu_custom_call.1} parent=35 // pred_region
          %220 = dma.done [#allocation6], 512
        $region44: #{tpu_custom_call.1} parent=35 // pred_fallthru
          _
        // Predicated region
        $region45: #{tpu_custom_call.1} parent=35 // pred_check
          %p221 = pneg %p85
        $region46: #{tpu_custom_call.1} parent=35 // pred_check_branch
          %223 = sbr.rel (%p221) target = $region48
        $region47: #{tpu_custom_call.1} parent=35 // pred_region
          %224 = dma.done [#allocation6], 512
        $region48: #{tpu_custom_call.1} parent=35 // pred_fallthru
          _
        %s225 = sand.u32 %s30, 1
        %s226 = scalar_lea.sflag [#allocation3], %s225
        %s227 = sand.u32 %s30, 1
        %s228 = smul.addr %s227, 16
        %s229 = scalar_lea.vmem [#allocation2], %s228
        %p230 = pneg %p43
        %p231 = pneg %p40
        %p232 = pneg %p64
        %p233 = pneg %p61
        %p234 = pneg %p85
        %p235 = pneg %p82
        %p236 = pneg %p106
        %p237 = pneg %p103
        %p238 = pneg %p132
        %p239 = pneg %p129
        %s240 = sand.u32 %s119, 1
        %s241 = scalar_lea.sflag [#allocation4], %s240
        %s242 = sand.u32 %s119, 1
        %s243 = smul.addr %s242, 16
        %s244 = scalar_lea.vmem [#allocation8], %s243
        %v245 = vld [vmem:[%s212] sm:$0xff]
        %v246 = vld [vmem:[%s212 + $0x8] sm:$0xff]
        %v247 = vld [vmem:[#allocation5] sm:$0xff]
        %v248 = vld [vmem:[#allocation5 + $0x8] sm:$0xff]
        %v249 = vld [vmem:[#allocation5 + $0x10] sm:$0xff]
        %v250 = vld [vmem:[#allocation5 + $0x18] sm:$0xff]
        %vm251 = vcmask 261120
        %v253 = vsel %vm251, %v245, 0
        %v256 = vsel %vm251, %v246, 0
        %258 = vmatprep.subr.mxu0 0.0
        %259 = vmatpush1.msra.mxu0 %v247
        %260 = vmatprep.subr.mxu0 0.0
        %261 = vmatpush1.msra.mxu0 %v248
        %262 = vmatprep.subr.mxu0 0.0
        %263 = vmatpush1.msra.mxu0 %v249
        %264 = vmatprep.subr.mxu0 0.0
        %265 = vmatpush1.msra.mxu0 %v250
        %266 = vmatprep.subr.mxu0 0.0
        %267 = vmatpush1.msra.mxu0 0.0
        %268 = vmatprep.subr.mxu0 0.0
        %269 = vmatpush1.msra.mxu0 0.0
        %270 = vmatprep.subr.mxu0 0.0
        %271 = vmatpush1.msra.mxu0 0.0
        %272 = vmatprep.subr.mxu0 0.0
        %273 = vmatpush1.msra.mxu0 0.0
        %274 = vmatprep.subr.mxu0 0.0
        %275 = vmatpush1.msra.mxu0 0.0
        %276 = vmatprep.subr.mxu0 0.0
        %277 = vmatpush1.msra.mxu0 0.0
        %278 = vmatprep.subr.mxu0 0.0
        %279 = vmatpush1.msra.mxu0 0.0
        %280 = vmatprep.subr.mxu0 0.0
        %281 = vmatpush1.msra.mxu0 0.0
        %282 = vmatprep.subr.mxu0 0.0
        %283 = vmatpush1.msra.mxu0 0.0
        %284 = vmatprep.subr.mxu0 0.0
        %285 = vmatpush1.msra.mxu0 0.0
        %286 = vmatprep.subr.mxu0 0.0
        %287 = vmatpush1.msra.mxu0 0.0
        %288 = vmatprep.subr.mxu0 0.0
        %289 = vmatpush1.msra.mxu0 0.0
        %290 = vmatprep.subr.mxu0 0.0
        %291 = vmatpush1.msra.mxu0 0.0
        %292 = vmatprep.subr.mxu0 0.0
        %293 = vmatpush1.msra.mxu0 0.0
        %294 = vmatprep.subr.mxu0 0.0
        %295 = vmatpush1.msra.mxu0 0.0
        %296 = vmatprep.subr.mxu0 0.0
        %297 = vmatpush1.msra.mxu0 0.0
        %298 = vmatprep.subr.mxu0 0.0
        %299 = vmatpush1.msra.mxu0 0.0
        %300 = vmatprep.subr.mxu0 0.0
        %301 = vmatpush1.msra.mxu0 0.0
        %302 = vmatprep.subr.mxu0 0.0
        %303 = vmatpush1.msra.mxu0 0.0
        %304 = vmatprep.subr.mxu0 0.0
        %305 = vmatpush1.msra.mxu0 0.0
        %306 = vmatprep.subr.mxu0 0.0
        %307 = vmatpush1.msra.mxu0 0.0
        %308 = vmatprep.subr.mxu0 0.0
        %309 = vmatpush1.msra.mxu0 0.0
        %310 = vmatprep.subr.mxu0 0.0
        %311 = vmatpush1.msra.mxu0 0.0
        %312 = vmatprep.subr.mxu0 0.0
        %313 = vmatpush1.msra.mxu0 0.0
        %314 = vmatprep.subr.mxu0 0.0
        %315 = vmatpush1.msra.mxu0 0.0
        %316 = vmatprep.subr.mxu0 0.0
        %317 = vmatpush1.msra.mxu0 0.0
        %318 = vmatprep.subr.mxu0 0.0
        %319 = vmatpush1.msra.mxu0 0.0
        %320 = vmatprep.subr.mxu0 0.0
        %321 = vmatpush1.msra.mxu0 0.0
        %322 = vmatprep.mubr.f32.mxu0 0.0
        %323 = vmatmul.mubr.f32.gmra.mrb[0].mxu0 %v253
        %v324 = vpop.f32.mrb[0].mxu0
        %v325 = vadd.f32 0.0, %v324
        %v326 = vpop.f32.mrb[0].mxu0
        %327 = vmatprep.mubr.f32.mxu0 0.0
        %328 = vmatmul.mubr.f32.gmra.mrb[0].mxu0 %v256
        %v329 = vpop.f32.mrb[0].mxu0
        %v330 = vadd.f32 0.0, %v329
        %v331 = vpop.f32.mrb[0].mxu0
        %332 = vdwg.mxu0
        %v333 = vld [vmem:[#allocation7] sm:$0xff]
        %v334 = vld [vmem:[#allocation7 + $0x8] sm:$0xff]
        %v335 = vld [vmem:[#allocation7 + $0x10] sm:$0xff]
        %v336 = vld [vmem:[#allocation7 + $0x18] sm:$0xff]
        %339 = vrot.lane.b32.xlu0 %v325, 96
        %v340 = vpop.permute.xlu0 %339
        %341 = vrot.lane.b32.xlu0 %v330, 96
        %v342 = vpop.permute.xlu0 %341
        %vm343 = vcmask 64512
        %v344 = vsel %vm343, %v325, 0
        %v346 = vsel %vm343, %v330, 0
        %v348 = vsel %vm343, %v340, 0
        %v350 = vsel %vm343, %v342, 0
        %352 = vmatprep.subr.mxu0 0.0
        %353 = vmatpush1.xpose.msra.mxu0 %v348
        %354 = vmatprep.subr.mxu0 0.0
        %355 = vmatpush1.xpose.msra.mxu0 %v350
        %356 = vmatprep.subr.mxu0 0.0
        %357 = vmatpush1.xpose.msra.mxu0 0.0
        %358 = vmatprep.subr.mxu0 0.0
        %359 = vmatpush1.xpose.msra.mxu0 0.0
        %360 = vmatprep.subr.mxu0 0.0
        %361 = vmatpush1.xpose.msra.mxu0 0.0
        %362 = vmatprep.subr.mxu0 0.0
        %363 = vmatpush1.xpose.msra.mxu0 0.0
        %364 = vmatprep.subr.mxu0 0.0
        %365 = vmatpush1.xpose.msra.mxu0 0.0
        %366 = vmatprep.subr.mxu0 0.0
        %367 = vmatpush1.xpose.msra.mxu0 0.0
        %368 = vmatprep.subr.mxu0 0.0
        %369 = vmatpush1.xpose.msra.mxu0 0.0
        %370 = vmatprep.subr.mxu0 0.0
        %371 = vmatpush1.xpose.msra.mxu0 0.0
        %372 = vmatprep.subr.mxu0 0.0
        %373 = vmatpush1.xpose.msra.mxu0 0.0
        %374 = vmatprep.subr.mxu0 0.0
        %375 = vmatpush1.xpose.msra.mxu0 0.0
        %376 = vmatprep.subr.mxu0 0.0
        %377 = vmatpush1.xpose.msra.mxu0 0.0
        %378 = vmatprep.subr.mxu0 0.0
        %379 = vmatpush1.xpose.msra.mxu0 0.0
        %380 = vmatprep.subr.mxu0 0.0
        %381 = vmatpush1.xpose.msra.mxu0 0.0
        %382 = vmatprep.subr.mxu0 0.0
        %383 = vmatpush1.xpose.msra.mxu0 0.0
        %384 = vmatprep.subr.mxu0 0.0
        %385 = vmatpush1.xpose.msra.mxu0 0.0
        %386 = vmatprep.subr.mxu0 0.0
        %387 = vmatpush1.xpose.msra.mxu0 0.0
        %388 = vmatprep.subr.mxu0 0.0
        %389 = vmatpush1.xpose.msra.mxu0 0.0
        %390 = vmatprep.subr.mxu0 0.0
        %391 = vmatpush1.xpose.msra.mxu0 0.0
        %392 = vmatprep.subr.mxu0 0.0
        %393 = vmatpush1.xpose.msra.mxu0 0.0
        %394 = vmatprep.subr.mxu0 0.0
        %395 = vmatpush1.xpose.msra.mxu0 0.0
        %396 = vmatprep.subr.mxu0 0.0
        %397 = vmatpush1.xpose.msra.mxu0 0.0
        %398 = vmatprep.subr.mxu0 0.0
        %399 = vmatpush1.xpose.msra.mxu0 0.0
        %400 = vmatprep.subr.mxu0 0.0
        %401 = vmatpush1.xpose.msra.mxu0 0.0
        %402 = vmatprep.subr.mxu0 0.0
        %403 = vmatpush1.xpose.msra.mxu0 0.0
        %404 = vmatprep.subr.mxu0 0.0
        %405 = vmatpush1.xpose.msra.mxu0 0.0
        %406 = vmatprep.subr.mxu0 0.0
        %407 = vmatpush1.xpose.msra.mxu0 0.0
        %408 = vmatprep.subr.mxu0 0.0
        %409 = vmatpush1.xpose.msra.mxu0 0.0
        %410 = vmatprep.subr.mxu0 0.0
        %411 = vmatpush1.xpose.msra.mxu0 0.0
        %412 = vmatprep.subr.mxu0 0.0
        %413 = vmatpush1.xpose.msra.mxu0 0.0
        %414 = vmatprep.subr.mxu0 0.0
        %415 = vmatpush1.xpose.msra.mxu0 0.0
        %416 = vmatprep.mubr.f32.mxu0 0.0
        %417 = vmatmul.mubr.f32.gmra.mrb[0].mxu0 %v344
        %v418 = vpop.f32.mrb[0].mxu0
        %v419 = vadd.f32 0.0, %v418
        %v420 = vpop.f32.mrb[0].mxu0
        %421 = vmatprep.mubr.f32.mxu0 0.0
        %422 = vmatmul.mubr.f32.gmra.mrb[0].mxu0 %v346
        %v423 = vpop.f32.mrb[0].mxu0
        %v424 = vadd.f32 0.0, %v423
        %v425 = vpop.f32.mrb[0].mxu0
        %426 = vdwg.mxu0
        %vm427 = vcmask 130048
        %v428 = vsel %vm427, %v419, -inf
        %429 = vmax.xlane.f32.xlu0 %v428
        %v430 = vpop.xlane.xlu0 %429
        %v431 = vsel %vm427, %v424, -inf
        %432 = vmax.xlane.f32.xlu0 %v431
        %v433 = vpop.xlane.xlu0 %432
        %v434 = vsub.f32 %v419, %v430
        %v435 = vsub.f32 %v424, %v433
        %v436 = vmul.f32 %v434, 1.442695
        %v437 = vpow.pop %v436
        %v438 = vmul.f32 %v435, 1.442695
        %v439 = vpow.pop %v438
        %v440 = vsel %vm427, %v437, 0.0
        %441 = vadd.xlane.f32.xlu0 %v440
        %v442 = vpop.xlane.xlu0 %441
        %v443 = vsel %vm427, %v439, 0.0
        %444 = vadd.xlane.f32.xlu0 %v443
        %v445 = vpop.xlane.xlu0 %444
        %446 = vrot.lane.b32.xlu0 %v325, 64
        %v447 = vpop.permute.xlu0 %446
        %448 = vrot.lane.b32.xlu0 %v330, 64
        %v449 = vpop.permute.xlu0 %448
        %v453 = vsel %vm427, %v437, 0
        %v456 = vsel %vm427, %v439, 0
        %458 = vmatprep.subr.mxu0 0.0
        %459 = vmatpush1.msra.mxu0 %v447
        %460 = vmatprep.subr.mxu0 0.0
        %461 = vmatpush1.msra.mxu0 %v449
        %462 = vmatprep.subr.mxu0 0.0
        %463 = vmatpush1.msra.mxu0 0.0
        %464 = vmatprep.subr.mxu0 0.0
        %465 = vmatpush1.msra.mxu0 0.0
        %466 = vmatprep.subr.mxu0 0.0
        %467 = vmatpush1.msra.mxu0 0.0
        %468 = vmatprep.subr.mxu0 0.0
        %469 = vmatpush1.msra.mxu0 0.0
        %470 = vmatprep.subr.mxu0 0.0
        %471 = vmatpush1.msra.mxu0 0.0
        %472 = vmatprep.subr.mxu0 0.0
        %473 = vmatpush1.msra.mxu0 0.0
        %474 = vmatprep.subr.mxu0 0.0
        %475 = vmatpush1.msra.mxu0 0.0
        %476 = vmatprep.subr.mxu0 0.0
        %477 = vmatpush1.msra.mxu0 0.0
        %478 = vmatprep.subr.mxu0 0.0
        %479 = vmatpush1.msra.mxu0 0.0
        %480 = vmatprep.subr.mxu0 0.0
        %481 = vmatpush1.msra.mxu0 0.0
        %482 = vmatprep.subr.mxu0 0.0
        %483 = vmatpush1.msra.mxu0 0.0
        %484 = vmatprep.subr.mxu0 0.0
        %485 = vmatpush1.msra.mxu0 0.0
        %486 = vmatprep.subr.mxu0 0.0
        %487 = vmatpush1.msra.mxu0 0.0
        %488 = vmatprep.subr.mxu0 0.0
        %489 = vmatpush1.msra.mxu0 0.0
        %490 = vmatprep.subr.mxu0 0.0
        %491 = vmatpush1.msra.mxu0 0.0
        %492 = vmatprep.subr.mxu0 0.0
        %493 = vmatpush1.msra.mxu0 0.0
        %494 = vmatprep.subr.mxu0 0.0
        %495 = vmatpush1.msra.mxu0 0.0
        %496 = vmatprep.subr.mxu0 0.0
        %497 = vmatpush1.msra.mxu0 0.0
        %498 = vmatprep.subr.mxu0 0.0
        %499 = vmatpush1.msra.mxu0 0.0
        %500 = vmatprep.subr.mxu0 0.0
        %501 = vmatpush1.msra.mxu0 0.0
        %502 = vmatprep.subr.mxu0 0.0
        %503 = vmatpush1.msra.mxu0 0.0
        %504 = vmatprep.subr.mxu0 0.0
        %505 = vmatpush1.msra.mxu0 0.0
        %506 = vmatprep.subr.mxu0 0.0
        %507 = vmatpush1.msra.mxu0 0.0
        %508 = vmatprep.subr.mxu0 0.0
        %509 = vmatpush1.msra.mxu0 0.0
        %510 = vmatprep.subr.mxu0 0.0
        %511 = vmatpush1.msra.mxu0 0.0
        %512 = vmatprep.subr.mxu0 0.0
        %513 = vmatpush1.msra.mxu0 0.0
        %514 = vmatprep.subr.mxu0 0.0
        %515 = vmatpush1.msra.mxu0 0.0
        %516 = vmatprep.subr.mxu0 0.0
        %517 = vmatpush1.msra.mxu0 0.0
        %518 = vmatprep.subr.mxu0 0.0
        %519 = vmatpush1.msra.mxu0 0.0
        %520 = vmatprep.subr.mxu0 0.0
        %521 = vmatpush1.msra.mxu0 0.0
        %522 = vmatprep.mubr.f32.mxu0 0.0
        %523 = vmatmul.mubr.f32.gmra.mrb[0].mxu0 %v453
        %v524 = vpop.f32.mrb[0].mxu0
        %v525 = vadd.f32 0.0, %v524
        %v526 = vpop.f32.mrb[0].mxu0
        %527 = vmatprep.mubr.f32.mxu0 0.0
        %528 = vmatmul.mubr.f32.gmra.mrb[0].mxu0 %v456
        %v529 = vpop.f32.mrb[0].mxu0
        %v530 = vadd.f32 0.0, %v529
        %v531 = vpop.f32.mrb[0].mxu0
        %532 = vdwg.mxu0
        %v533 = vrcp.pop %v442
        %v534 = vrcp.pop %v445
        %v535 = vmul.f32 %v525, %v533
        %v536 = vmul.f32 %v530, %v534
        %537 = vrot.lane.b32.xlu0 %v325, 120
        %v538 = vpop.permute.xlu0 %537
        %539 = vrot.lane.b32.xlu0 %v330, 120
        %v540 = vpop.permute.xlu0 %539
        %541 = vrot.lane.b32.xlu0 %v325, 88
        %v542 = vpop.permute.xlu0 %541
        %543 = vrot.lane.b32.xlu0 %v330, 88
        %v544 = vpop.permute.xlu0 %543
        %v545 = vsel %vm343, %v538, 0
        %v547 = vsel %vm343, %v540, 0
        %v549 = vsel %vm343, %v542, 0
        %v551 = vsel %vm343, %v544, 0
        %553 = vmatprep.subr.mxu0 0.0
        %554 = vmatpush1.xpose.msra.mxu0 %v549
        %555 = vmatprep.subr.mxu0 0.0
        %556 = vmatpush1.xpose.msra.mxu0 %v551
        %557 = vmatprep.subr.mxu0 0.0
        %558 = vmatpush1.xpose.msra.mxu0 0.0
        %559 = vmatprep.subr.mxu0 0.0
        %560 = vmatpush1.xpose.msra.mxu0 0.0
        %561 = vmatprep.subr.mxu0 0.0
        %562 = vmatpush1.xpose.msra.mxu0 0.0
        %563 = vmatprep.subr.mxu0 0.0
        %564 = vmatpush1.xpose.msra.mxu0 0.0
        %565 = vmatprep.subr.mxu0 0.0
        %566 = vmatpush1.xpose.msra.mxu0 0.0
        %567 = vmatprep.subr.mxu0 0.0
        %568 = vmatpush1.xpose.msra.mxu0 0.0
        %569 = vmatprep.subr.mxu0 0.0
        %570 = vmatpush1.xpose.msra.mxu0 0.0
        %571 = vmatprep.subr.mxu0 0.0
        %572 = vmatpush1.xpose.msra.mxu0 0.0
        %573 = vmatprep.subr.mxu0 0.0
        %574 = vmatpush1.xpose.msra.mxu0 0.0
        %575 = vmatprep.subr.mxu0 0.0
        %576 = vmatpush1.xpose.msra.mxu0 0.0
        %577 = vmatprep.subr.mxu0 0.0
        %578 = vmatpush1.xpose.msra.mxu0 0.0
        %579 = vmatprep.subr.mxu0 0.0
        %580 = vmatpush1.xpose.msra.mxu0 0.0
        %581 = vmatprep.subr.mxu0 0.0
        %582 = vmatpush1.xpose.msra.mxu0 0.0
        %583 = vmatprep.subr.mxu0 0.0
        %584 = vmatpush1.xpose.msra.mxu0 0.0
        %585 = vmatprep.subr.mxu0 0.0
        %586 = vmatpush1.xpose.msra.mxu0 0.0
        %587 = vmatprep.subr.mxu0 0.0
        %588 = vmatpush1.xpose.msra.mxu0 0.0
        %589 = vmatprep.subr.mxu0 0.0
        %590 = vmatpush1.xpose.msra.mxu0 0.0
        %591 = vmatprep.subr.mxu0 0.0
        %592 = vmatpush1.xpose.msra.mxu0 0.0
        %593 = vmatprep.subr.mxu0 0.0
        %594 = vmatpush1.xpose.msra.mxu0 0.0
        %595 = vmatprep.subr.mxu0 0.0
        %596 = vmatpush1.xpose.msra.mxu0 0.0
        %597 = vmatprep.subr.mxu0 0.0
        %598 = vmatpush1.xpose.msra.mxu0 0.0
        %599 = vmatprep.subr.mxu0 0.0
        %600 = vmatpush1.xpose.msra.mxu0 0.0
        %601 = vmatprep.subr.mxu0 0.0
        %602 = vmatpush1.xpose.msra.mxu0 0.0
        %603 = vmatprep.subr.mxu0 0.0
        %604 = vmatpush1.xpose.msra.mxu0 0.0
        %605 = vmatprep.subr.mxu0 0.0
        %606 = vmatpush1.xpose.msra.mxu0 0.0
        %607 = vmatprep.subr.mxu0 0.0
        %608 = vmatpush1.xpose.msra.mxu0 0.0
        %609 = vmatprep.subr.mxu0 0.0
        %610 = vmatpush1.xpose.msra.mxu0 0.0
        %611 = vmatprep.subr.mxu0 0.0
        %612 = vmatpush1.xpose.msra.mxu0 0.0
        %613 = vmatprep.subr.mxu0 0.0
        %614 = vmatpush1.xpose.msra.mxu0 0.0
        %615 = vmatprep.subr.mxu0 0.0
        %616 = vmatpush1.xpose.msra.mxu0 0.0
        %617 = vmatprep.mubr.f32.mxu0 0.0
        %618 = vmatmul.mubr.f32.gmra.mrb[0].mxu0 %v545
        %v619 = vpop.f32.mrb[0].mxu0
        %v620 = vadd.f32 0.0, %v619
        %v621 = vpop.f32.mrb[0].mxu0
        %622 = vmatprep.mubr.f32.mxu0 0.0
        %623 = vmatmul.mubr.f32.gmra.mrb[0].mxu0 %v547
        %v624 = vpop.f32.mrb[0].mxu0
        %v625 = vadd.f32 0.0, %v624
        %v626 = vpop.f32.mrb[0].mxu0
        %627 = vdwg.mxu0
        %v628 = vsel %vm427, %v620, -inf
        %629 = vmax.xlane.f32.xlu0 %v628
        %v630 = vpop.xlane.xlu0 %629
        %v631 = vsel %vm427, %v625, -inf
        %632 = vmax.xlane.f32.xlu0 %v631
        %v633 = vpop.xlane.xlu0 %632
        %v634 = vsub.f32 %v620, %v630
        %v635 = vsub.f32 %v625, %v633
        %v636 = vmul.f32 %v634, 1.442695
        %v637 = vpow.pop %v636
        %v638 = vmul.f32 %v635, 1.442695
        %v639 = vpow.pop %v638
        %v640 = vsel %vm427, %v637, 0.0
        %641 = vadd.xlane.f32.xlu0 %v640
        %v642 = vpop.xlane.xlu0 %641
        %v643 = vsel %vm427, %v639, 0.0
        %644 = vadd.xlane.f32.xlu0 %v643
        %v645 = vpop.xlane.xlu0 %644
        %646 = vrot.lane.b32.xlu0 %v325, 56
        %v647 = vpop.permute.xlu0 %646
        %648 = vrot.lane.b32.xlu0 %v330, 56
        %v649 = vpop.permute.xlu0 %648
        %v653 = vsel %vm427, %v637, 0
        %v656 = vsel %vm427, %v639, 0
        %658 = vmatprep.subr.mxu0 0.0
        %659 = vmatpush1.msra.mxu0 %v647
        %660 = vmatprep.subr.mxu0 0.0
        %661 = vmatpush1.msra.mxu0 %v649
        %662 = vmatprep.subr.mxu0 0.0
        %663 = vmatpush1.msra.mxu0 0.0
        %664 = vmatprep.subr.mxu0 0.0
        %665 = vmatpush1.msra.mxu0 0.0
        %666 = vmatprep.subr.mxu0 0.0
        %667 = vmatpush1.msra.mxu0 0.0
        %668 = vmatprep.subr.mxu0 0.0
        %669 = vmatpush1.msra.mxu0 0.0
        %670 = vmatprep.subr.mxu0 0.0
        %671 = vmatpush1.msra.mxu0 0.0
        %672 = vmatprep.subr.mxu0 0.0
        %673 = vmatpush1.msra.mxu0 0.0
        %674 = vmatprep.subr.mxu0 0.0
        %675 = vmatpush1.msra.mxu0 0.0
        %676 = vmatprep.subr.mxu0 0.0
        %677 = vmatpush1.msra.mxu0 0.0
        %678 = vmatprep.subr.mxu0 0.0
        %679 = vmatpush1.msra.mxu0 0.0
        %680 = vmatprep.subr.mxu0 0.0
        %681 = vmatpush1.msra.mxu0 0.0
        %682 = vmatprep.subr.mxu0 0.0
        %683 = vmatpush1.msra.mxu0 0.0
        %684 = vmatprep.subr.mxu0 0.0
        %685 = vmatpush1.msra.mxu0 0.0
        %686 = vmatprep.subr.mxu0 0.0
        %687 = vmatpush1.msra.mxu0 0.0
        %688 = vmatprep.subr.mxu0 0.0
        %689 = vmatpush1.msra.mxu0 0.0
        %690 = vmatprep.subr.mxu0 0.0
        %691 = vmatpush1.msra.mxu0 0.0
        %692 = vmatprep.subr.mxu0 0.0
        %693 = vmatpush1.msra.mxu0 0.0
        %694 = vmatprep.subr.mxu0 0.0
        %695 = vmatpush1.msra.mxu0 0.0
        %696 = vmatprep.subr.mxu0 0.0
        %697 = vmatpush1.msra.mxu0 0.0
        %698 = vmatprep.subr.mxu0 0.0
        %699 = vmatpush1.msra.mxu0 0.0
        %700 = vmatprep.subr.mxu0 0.0
        %701 = vmatpush1.msra.mxu0 0.0
        %702 = vmatprep.subr.mxu0 0.0
        %703 = vmatpush1.msra.mxu0 0.0
        %704 = vmatprep.subr.mxu0 0.0
        %705 = vmatpush1.msra.mxu0 0.0
        %706 = vmatprep.subr.mxu0 0.0
        %707 = vmatpush1.msra.mxu0 0.0
        %708 = vmatprep.subr.mxu0 0.0
        %709 = vmatpush1.msra.mxu0 0.0
        %710 = vmatprep.subr.mxu0 0.0
        %711 = vmatpush1.msra.mxu0 0.0
        %712 = vmatprep.subr.mxu0 0.0
        %713 = vmatpush1.msra.mxu0 0.0
        %714 = vmatprep.subr.mxu0 0.0
        %715 = vmatpush1.msra.mxu0 0.0
        %716 = vmatprep.subr.mxu0 0.0
        %717 = vmatpush1.msra.mxu0 0.0
        %718 = vmatprep.subr.mxu0 0.0
        %719 = vmatpush1.msra.mxu0 0.0
        %720 = vmatprep.subr.mxu0 0.0
        %721 = vmatpush1.msra.mxu0 0.0
        %722 = vmatprep.mubr.f32.mxu0 0.0
        %723 = vmatmul.mubr.f32.gmra.mrb[0].mxu0 %v653
        %v724 = vpop.f32.mrb[0].mxu0
        %v725 = vadd.f32 0.0, %v724
        %v726 = vpop.f32.mrb[0].mxu0
        %727 = vmatprep.mubr.f32.mxu0 0.0
        %728 = vmatmul.mubr.f32.gmra.mrb[0].mxu0 %v656
        %v729 = vpop.f32.mrb[0].mxu0
        %v730 = vadd.f32 0.0, %v729
        %v731 = vpop.f32.mrb[0].mxu0
        %732 = vdwg.mxu0
        %v733 = vrcp.pop %v642
        %v734 = vrcp.pop %v645
        %v735 = vmul.f32 %v725, %v733
        %v736 = vmul.f32 %v730, %v734
        %v738 = vsel %vm343, %v735, 0
        %v741 = vsel %vm343, %v736, 0
        %743 = vmatprep.subr.mxu0 0.0
        %744 = vmatpush1.msra.mxu0 %v334
        %745 = vmatprep.subr.mxu0 0.0
        %746 = vmatpush1.msra.mxu0 0.0
        %747 = vmatprep.subr.mxu0 0.0
        %748 = vmatpush1.msra.mxu0 0.0
        %749 = vmatprep.subr.mxu0 0.0
        %750 = vmatpush1.msra.mxu0 0.0
        %751 = vmatprep.subr.mxu0 0.0
        %752 = vmatpush1.msra.mxu0 0.0
        %753 = vmatprep.subr.mxu0 0.0
        %754 = vmatpush1.msra.mxu0 0.0
        %755 = vmatprep.subr.mxu0 0.0
        %756 = vmatpush1.msra.mxu0 0.0
        %757 = vmatprep.subr.mxu0 0.0
        %758 = vmatpush1.msra.mxu0 0.0
        %759 = vmatprep.subr.mxu0 0.0
        %760 = vmatpush1.msra.mxu0 0.0
        %761 = vmatprep.subr.mxu0 0.0
        %762 = vmatpush1.msra.mxu0 0.0
        %763 = vmatprep.subr.mxu0 0.0
        %764 = vmatpush1.msra.mxu0 0.0
        %765 = vmatprep.subr.mxu0 0.0
        %766 = vmatpush1.msra.mxu0 0.0
        %767 = vmatprep.subr.mxu0 0.0
        %768 = vmatpush1.msra.mxu0 0.0
        %769 = vmatprep.subr.mxu0 0.0
        %770 = vmatpush1.msra.mxu0 0.0
        %771 = vmatprep.subr.mxu0 0.0
        %772 = vmatpush1.msra.mxu0 0.0
        %773 = vmatprep.subr.mxu0 0.0
        %774 = vmatpush1.msra.mxu0 0.0
        %775 = vmatprep.subr.mxu0 0.0
        %776 = vmatpush1.msra.mxu0 0.0
        %777 = vmatprep.subr.mxu0 0.0
        %778 = vmatpush1.msra.mxu0 0.0
        %779 = vmatprep.subr.mxu0 0.0
        %780 = vmatpush1.msra.mxu0 0.0
        %781 = vmatprep.subr.mxu0 0.0
        %782 = vmatpush1.msra.mxu0 0.0
        %783 = vmatprep.subr.mxu0 0.0
        %784 = vmatpush1.msra.mxu0 0.0
        %785 = vmatprep.subr.mxu0 0.0
        %786 = vmatpush1.msra.mxu0 0.0
        %787 = vmatprep.subr.mxu0 0.0
        %788 = vmatpush1.msra.mxu0 0.0
        %789 = vmatprep.subr.mxu0 0.0
        %790 = vmatpush1.msra.mxu0 0.0
        %791 = vmatprep.subr.mxu0 0.0
        %792 = vmatpush1.msra.mxu0 0.0
        %793 = vmatprep.subr.mxu0 0.0
        %794 = vmatpush1.msra.mxu0 0.0
        %795 = vmatprep.subr.mxu0 0.0
        %796 = vmatpush1.msra.mxu0 0.0
        %797 = vmatprep.subr.mxu0 0.0
        %798 = vmatpush1.msra.mxu0 0.0
        %799 = vmatprep.subr.mxu0 0.0
        %800 = vmatpush1.msra.mxu0 0.0
        %801 = vmatprep.subr.mxu0 0.0
        %802 = vmatpush1.msra.mxu0 0.0
        %803 = vmatprep.subr.mxu0 0.0
        %804 = vmatpush1.msra.mxu0 0.0
        %805 = vmatprep.subr.mxu0 0.0
        %806 = vmatpush1.msra.mxu0 0.0
        %807 = vmatprep.mubr.f32.mxu0 0.0
        %808 = vmatmul.mubr.f32.gmra.mrb[0].mxu0 %v738
        %v809 = vpop.f32.mrb[0].mxu0
        %v810 = vadd.f32 0.0, %v809
        %v811 = vpop.f32.mrb[0].mxu0
        %812 = vmatprep.mubr.f32.mxu0 0.0
        %813 = vmatmul.mubr.f32.gmra.mrb[0].mxu0 %v741
        %v814 = vpop.f32.mrb[0].mxu0
        %v815 = vadd.f32 0.0, %v814
        %v816 = vpop.f32.mrb[0].mxu0
        %817 = vdwg.mxu0
        %v819 = vsel %vm343, %v535, 0
        %v822 = vsel %vm343, %v536, 0
        %824 = vmatprep.subr.mxu0 0.0
        %825 = vmatpush1.msra.mxu0 %v333
        %826 = vmatprep.subr.mxu0 0.0
        %827 = vmatpush1.msra.mxu0 0.0
        %828 = vmatprep.subr.mxu0 0.0
        %829 = vmatpush1.msra.mxu0 0.0
        %830 = vmatprep.subr.mxu0 0.0
        %831 = vmatpush1.msra.mxu0 0.0
        %832 = vmatprep.subr.mxu0 0.0
        %833 = vmatpush1.msra.mxu0 0.0
        %834 = vmatprep.subr.mxu0 0.0
        %835 = vmatpush1.msra.mxu0 0.0
        %836 = vmatprep.subr.mxu0 0.0
        %837 = vmatpush1.msra.mxu0 0.0
        %838 = vmatprep.subr.mxu0 0.0
        %839 = vmatpush1.msra.mxu0 0.0
        %840 = vmatprep.subr.mxu0 0.0
        %841 = vmatpush1.msra.mxu0 0.0
        %842 = vmatprep.subr.mxu0 0.0
        %843 = vmatpush1.msra.mxu0 0.0
        %844 = vmatprep.subr.mxu0 0.0
        %845 = vmatpush1.msra.mxu0 0.0
        %846 = vmatprep.subr.mxu0 0.0
        %847 = vmatpush1.msra.mxu0 0.0
        %848 = vmatprep.subr.mxu0 0.0
        %849 = vmatpush1.msra.mxu0 0.0
        %850 = vmatprep.subr.mxu0 0.0
        %851 = vmatpush1.msra.mxu0 0.0
        %852 = vmatprep.subr.mxu0 0.0
        %853 = vmatpush1.msra.mxu0 0.0
        %854 = vmatprep.subr.mxu0 0.0
        %855 = vmatpush1.msra.mxu0 0.0
        %856 = vmatprep.subr.mxu0 0.0
        %857 = vmatpush1.msra.mxu0 0.0
        %858 = vmatprep.subr.mxu0 0.0
        %859 = vmatpush1.msra.mxu0 0.0
        %860 = vmatprep.subr.mxu0 0.0
        %861 = vmatpush1.msra.mxu0 0.0
        %862 = vmatprep.subr.mxu0 0.0
        %863 = vmatpush1.msra.mxu0 0.0
        %864 = vmatprep.subr.mxu0 0.0
        %865 = vmatpush1.msra.mxu0 0.0
        %866 = vmatprep.subr.mxu0 0.0
        %867 = vmatpush1.msra.mxu0 0.0
        %868 = vmatprep.subr.mxu0 0.0
        %869 = vmatpush1.msra.mxu0 0.0
        %870 = vmatprep.subr.mxu0 0.0
        %871 = vmatpush1.msra.mxu0 0.0
        %872 = vmatprep.subr.mxu0 0.0
        %873 = vmatpush1.msra.mxu0 0.0
        %874 = vmatprep.subr.mxu0 0.0
        %875 = vmatpush1.msra.mxu0 0.0
        %876 = vmatprep.subr.mxu0 0.0
        %877 = vmatpush1.msra.mxu0 0.0
        %878 = vmatprep.subr.mxu0 0.0
        %879 = vmatpush1.msra.mxu0 0.0
        %880 = vmatprep.subr.mxu0 0.0
        %881 = vmatpush1.msra.mxu0 0.0
        %882 = vmatprep.subr.mxu0 0.0
        %883 = vmatpush1.msra.mxu0 0.0
        %884 = vmatprep.subr.mxu0 0.0
        %885 = vmatpush1.msra.mxu0 0.0
        %886 = vmatprep.subr.mxu0 0.0
        %887 = vmatpush1.msra.mxu0 0.0
        %888 = vmatprep.mubr.f32.mxu0 0.0
        %889 = vmatmul.mubr.f32.gmra.mrb[0].mxu0 %v819
        %v890 = vpop.f32.mrb[0].mxu0
        %v891 = vadd.f32 %v810, %v890
        %v892 = vpop.f32.mrb[0].mxu0
        %893 = vmatprep.mubr.f32.mxu0 0.0
        %894 = vmatmul.mubr.f32.gmra.mrb[0].mxu0 %v822
        %v895 = vpop.f32.mrb[0].mxu0
        %v896 = vadd.f32 %v815, %v895
        %v897 = vpop.f32.mrb[0].mxu0
        %898 = vdwg.mxu0
        %899 = vrot.lane.b32.xlu0 %v325, 112
        %v900 = vpop.permute.xlu0 %899
        %901 = vrot.lane.b32.xlu0 %v330, 112
        %v902 = vpop.permute.xlu0 %901
        %903 = vrot.lane.b32.xlu0 %v325, 80
        %v904 = vpop.permute.xlu0 %903
        %905 = vrot.lane.b32.xlu0 %v330, 80
        %v906 = vpop.permute.xlu0 %905
        %v907 = vsel %vm343, %v900, 0
        %v909 = vsel %vm343, %v902, 0
        %v911 = vsel %vm343, %v904, 0
        %v913 = vsel %vm343, %v906, 0
        %915 = vmatprep.subr.mxu0 0.0
        %916 = vmatpush1.xpose.msra.mxu0 %v911
        %917 = vmatprep.subr.mxu0 0.0
        %918 = vmatpush1.xpose.msra.mxu0 %v913
        %919 = vmatprep.subr.mxu0 0.0
        %920 = vmatpush1.xpose.msra.mxu0 0.0
        %921 = vmatprep.subr.mxu0 0.0
        %922 = vmatpush1.xpose.msra.mxu0 0.0
        %923 = vmatprep.subr.mxu0 0.0
        %924 = vmatpush1.xpose.msra.mxu0 0.0
        %925 = vmatprep.subr.mxu0 0.0
        %926 = vmatpush1.xpose.msra.mxu0 0.0
        %927 = vmatprep.subr.mxu0 0.0
        %928 = vmatpush1.xpose.msra.mxu0 0.0
        %929 = vmatprep.subr.mxu0 0.0
        %930 = vmatpush1.xpose.msra.mxu0 0.0
        %931 = vmatprep.subr.mxu0 0.0
        %932 = vmatpush1.xpose.msra.mxu0 0.0
        %933 = vmatprep.subr.mxu0 0.0
        %934 = vmatpush1.xpose.msra.mxu0 0.0
        %935 = vmatprep.subr.mxu0 0.0
        %936 = vmatpush1.xpose.msra.mxu0 0.0
        %937 = vmatprep.subr.mxu0 0.0
        %938 = vmatpush1.xpose.msra.mxu0 0.0
        %939 = vmatprep.subr.mxu0 0.0
        %940 = vmatpush1.xpose.msra.mxu0 0.0
        %941 = vmatprep.subr.mxu0 0.0
        %942 = vmatpush1.xpose.msra.mxu0 0.0
        %943 = vmatprep.subr.mxu0 0.0
        %944 = vmatpush1.xpose.msra.mxu0 0.0
        %945 = vmatprep.subr.mxu0 0.0
        %946 = vmatpush1.xpose.msra.mxu0 0.0
        %947 = vmatprep.subr.mxu0 0.0
        %948 = vmatpush1.xpose.msra.mxu0 0.0
        %949 = vmatprep.subr.mxu0 0.0
        %950 = vmatpush1.xpose.msra.mxu0 0.0
        %951 = vmatprep.subr.mxu0 0.0
        %952 = vmatpush1.xpose.msra.mxu0 0.0
        %953 = vmatprep.subr.mxu0 0.0
        %954 = vmatpush1.xpose.msra.mxu0 0.0
        %955 = vmatprep.subr.mxu0 0.0
        %956 = vmatpush1.xpose.msra.mxu0 0.0
        %957 = vmatprep.subr.mxu0 0.0
        %958 = vmatpush1.xpose.msra.mxu0 0.0
        %959 = vmatprep.subr.mxu0 0.0
        %960 = vmatpush1.xpose.msra.mxu0 0.0
        %961 = vmatprep.subr.mxu0 0.0
        %962 = vmatpush1.xpose.msra.mxu0 0.0
        %963 = vmatprep.subr.mxu0 0.0
        %964 = vmatpush1.xpose.msra.mxu0 0.0
        %965 = vmatprep.subr.mxu0 0.0
        %966 = vmatpush1.xpose.msra.mxu0 0.0
        %967 = vmatprep.subr.mxu0 0.0
        %968 = vmatpush1.xpose.msra.mxu0 0.0
        %969 = vmatprep.subr.mxu0 0.0
        %970 = vmatpush1.xpose.msra.mxu0 0.0
        %971 = vmatprep.subr.mxu0 0.0
        %972 = vmatpush1.xpose.msra.mxu0 0.0
        %973 = vmatprep.subr.mxu0 0.0
        %974 = vmatpush1.xpose.msra.mxu0 0.0
        %975 = vmatprep.subr.mxu0 0.0
        %976 = vmatpush1.xpose.msra.mxu0 0.0
        %977 = vmatprep.subr.mxu0 0.0
        %978 = vmatpush1.xpose.msra.mxu0 0.0
        %979 = vmatprep.mubr.f32.mxu0 0.0
        %980 = vmatmul.mubr.f32.gmra.mrb[0].mxu0 %v907
        %v981 = vpop.f32.mrb[0].mxu0
        %v982 = vadd.f32 0.0, %v981
        %v983 = vpop.f32.mrb[0].mxu0
        %984 = vmatprep.mubr.f32.mxu0 0.0
        %985 = vmatmul.mubr.f32.gmra.mrb[0].mxu0 %v909
        %v986 = vpop.f32.mrb[0].mxu0
        %v987 = vadd.f32 0.0, %v986
        %v988 = vpop.f32.mrb[0].mxu0
        %989 = vdwg.mxu0
        %v990 = vsel %vm427, %v982, -inf
        %991 = vmax.xlane.f32.xlu0 %v990
        %v992 = vpop.xlane.xlu0 %991
        %v993 = vsel %vm427, %v987, -inf
        %994 = vmax.xlane.f32.xlu0 %v993
        %v995 = vpop.xlane.xlu0 %994
        %v996 = vsub.f32 %v982, %v992
        %v997 = vsub.f32 %v987, %v995
        %v998 = vmul.f32 %v996, 1.442695
        %v999 = vpow.pop %v998
        %v1000 = vmul.f32 %v997, 1.442695
        %v1001 = vpow.pop %v1000
        %v1002 = vsel %vm427, %v999, 0.0
        %1003 = vadd.xlane.f32.xlu0 %v1002
        %v1004 = vpop.xlane.xlu0 %1003
        %v1005 = vsel %vm427, %v1001, 0.0
        %1006 = vadd.xlane.f32.xlu0 %v1005
        %v1007 = vpop.xlane.xlu0 %1006
        %1008 = vrot.lane.b32.xlu0 %v325, 48
        %v1009 = vpop.permute.xlu0 %1008
        %1010 = vrot.lane.b32.xlu0 %v330, 48
        %v1011 = vpop.permute.xlu0 %1010
        %v1015 = vsel %vm427, %v999, 0
        %v1018 = vsel %vm427, %v1001, 0
        %1020 = vmatprep.subr.mxu0 0.0
        %1021 = vmatpush1.msra.mxu0 %v1009
        %1022 = vmatprep.subr.mxu0 0.0
        %1023 = vmatpush1.msra.mxu0 %v1011
        %1024 = vmatprep.subr.mxu0 0.0
        %1025 = vmatpush1.msra.mxu0 0.0
        %1026 = vmatprep.subr.mxu0 0.0
        %1027 = vmatpush1.msra.mxu0 0.0
        %1028 = vmatprep.subr.mxu0 0.0
        %1029 = vmatpush1.msra.mxu0 0.0
        %1030 = vmatprep.subr.mxu0 0.0
        %1031 = vmatpush1.msra.mxu0 0.0
        %1032 = vmatprep.subr.mxu0 0.0
        %1033 = vmatpush1.msra.mxu0 0.0
        %1034 = vmatprep.subr.mxu0 0.0
        %1035 = vmatpush1.msra.mxu0 0.0
        %1036 = vmatprep.subr.mxu0 0.0
        %1037 = vmatpush1.msra.mxu0 0.0
        %1038 = vmatprep.subr.mxu0 0.0
        %1039 = vmatpush1.msra.mxu0 0.0
        %1040 = vmatprep.subr.mxu0 0.0
        %1041 = vmatpush1.msra.mxu0 0.0
        %1042 = vmatprep.subr.mxu0 0.0
        %1043 = vmatpush1.msra.mxu0 0.0
        %1044 = vmatprep.subr.mxu0 0.0
        %1045 = vmatpush1.msra.mxu0 0.0
        %1046 = vmatprep.subr.mxu0 0.0
        %1047 = vmatpush1.msra.mxu0 0.0
        %1048 = vmatprep.subr.mxu0 0.0
        %1049 = vmatpush1.msra.mxu0 0.0
        %1050 = vmatprep.subr.mxu0 0.0
        %1051 = vmatpush1.msra.mxu0 0.0
        %1052 = vmatprep.subr.mxu0 0.0
        %1053 = vmatpush1.msra.mxu0 0.0
        %1054 = vmatprep.subr.mxu0 0.0
        %1055 = vmatpush1.msra.mxu0 0.0
        %1056 = vmatprep.subr.mxu0 0.0
        %1057 = vmatpush1.msra.mxu0 0.0
        %1058 = vmatprep.subr.mxu0 0.0
        %1059 = vmatpush1.msra.mxu0 0.0
        %1060 = vmatprep.subr.mxu0 0.0
        %1061 = vmatpush1.msra.mxu0 0.0
        %1062 = vmatprep.subr.mxu0 0.0
        %1063 = vmatpush1.msra.mxu0 0.0
        %1064 = vmatprep.subr.mxu0 0.0
        %1065 = vmatpush1.msra.mxu0 0.0
        %1066 = vmatprep.subr.mxu0 0.0
        %1067 = vmatpush1.msra.mxu0 0.0
        %1068 = vmatprep.subr.mxu0 0.0
        %1069 = vmatpush1.msra.mxu0 0.0
        %1070 = vmatprep.subr.mxu0 0.0
        %1071 = vmatpush1.msra.mxu0 0.0
        %1072 = vmatprep.subr.mxu0 0.0
        %1073 = vmatpush1.msra.mxu0 0.0
        %1074 = vmatprep.subr.mxu0 0.0
        %1075 = vmatpush1.msra.mxu0 0.0
        %1076 = vmatprep.subr.mxu0 0.0
        %1077 = vmatpush1.msra.mxu0 0.0
        %1078 = vmatprep.subr.mxu0 0.0
        %1079 = vmatpush1.msra.mxu0 0.0
        %1080 = vmatprep.subr.mxu0 0.0
        %1081 = vmatpush1.msra.mxu0 0.0
        %1082 = vmatprep.subr.mxu0 0.0
        %1083 = vmatpush1.msra.mxu0 0.0
        %1084 = vmatprep.mubr.f32.mxu0 0.0
        %1085 = vmatmul.mubr.f32.gmra.mrb[0].mxu0 %v1015
        %v1086 = vpop.f32.mrb[0].mxu0
        %v1087 = vadd.f32 0.0, %v1086
        %v1088 = vpop.f32.mrb[0].mxu0
        %1089 = vmatprep.mubr.f32.mxu0 0.0
        %1090 = vmatmul.mubr.f32.gmra.mrb[0].mxu0 %v1018
        %v1091 = vpop.f32.mrb[0].mxu0
        %v1092 = vadd.f32 0.0, %v1091
        %v1093 = vpop.f32.mrb[0].mxu0
        %1094 = vdwg.mxu0
        %v1095 = vrcp.pop %v1004
        %v1096 = vrcp.pop %v1007
        %v1097 = vmul.f32 %v1087, %v1095
        %v1098 = vmul.f32 %v1092, %v1096
        %v1100 = vsel %vm343, %v1097, 0
        %v1103 = vsel %vm343, %v1098, 0
        %1105 = vmatprep.subr.mxu0 0.0
        %1106 = vmatpush1.msra.mxu0 %v335
        %1107 = vmatprep.subr.mxu0 0.0
        %1108 = vmatpush1.msra.mxu0 0.0
        %1109 = vmatprep.subr.mxu0 0.0
        %1110 = vmatpush1.msra.mxu0 0.0
        %1111 = vmatprep.subr.mxu0 0.0
        %1112 = vmatpush1.msra.mxu0 0.0
        %1113 = vmatprep.subr.mxu0 0.0
        %1114 = vmatpush1.msra.mxu0 0.0
        %1115 = vmatprep.subr.mxu0 0.0
        %1116 = vmatpush1.msra.mxu0 0.0
        %1117 = vmatprep.subr.mxu0 0.0
        %1118 = vmatpush1.msra.mxu0 0.0
        %1119 = vmatprep.subr.mxu0 0.0
        %1120 = vmatpush1.msra.mxu0 0.0
        %1121 = vmatprep.subr.mxu0 0.0
        %1122 = vmatpush1.msra.mxu0 0.0
        %1123 = vmatprep.subr.mxu0 0.0
        %1124 = vmatpush1.msra.mxu0 0.0
        %1125 = vmatprep.subr.mxu0 0.0
        %1126 = vmatpush1.msra.mxu0 0.0
        %1127 = vmatprep.subr.mxu0 0.0
        %1128 = vmatpush1.msra.mxu0 0.0
        %1129 = vmatprep.subr.mxu0 0.0
        %1130 = vmatpush1.msra.mxu0 0.0
        %1131 = vmatprep.subr.mxu0 0.0
        %1132 = vmatpush1.msra.mxu0 0.0
        %1133 = vmatprep.subr.mxu0 0.0
        %1134 = vmatpush1.msra.mxu0 0.0
        %1135 = vmatprep.subr.mxu0 0.0
        %1136 = vmatpush1.msra.mxu0 0.0
        %1137 = vmatprep.subr.mxu0 0.0
        %1138 = vmatpush1.msra.mxu0 0.0
        %1139 = vmatprep.subr.mxu0 0.0
        %1140 = vmatpush1.msra.mxu0 0.0
        %1141 = vmatprep.subr.mxu0 0.0
        %1142 = vmatpush1.msra.mxu0 0.0
        %1143 = vmatprep.subr.mxu0 0.0
        %1144 = vmatpush1.msra.mxu0 0.0
        %1145 = vmatprep.subr.mxu0 0.0
        %1146 = vmatpush1.msra.mxu0 0.0
        %1147 = vmatprep.subr.mxu0 0.0
        %1148 = vmatpush1.msra.mxu0 0.0
        %1149 = vmatprep.subr.mxu0 0.0
        %1150 = vmatpush1.msra.mxu0 0.0
        %1151 = vmatprep.subr.mxu0 0.0
        %1152 = vmatpush1.msra.mxu0 0.0
        %1153 = vmatprep.subr.mxu0 0.0
        %1154 = vmatpush1.msra.mxu0 0.0
        %1155 = vmatprep.subr.mxu0 0.0
        %1156 = vmatpush1.msra.mxu0 0.0
        %1157 = vmatprep.subr.mxu0 0.0
        %1158 = vmatpush1.msra.mxu0 0.0
        %1159 = vmatprep.subr.mxu0 0.0
        %1160 = vmatpush1.msra.mxu0 0.0
        %1161 = vmatprep.subr.mxu0 0.0
        %1162 = vmatpush1.msra.mxu0 0.0
        %1163 = vmatprep.subr.mxu0 0.0
        %1164 = vmatpush1.msra.mxu0 0.0
        %1165 = vmatprep.subr.mxu0 0.0
        %1166 = vmatpush1.msra.mxu0 0.0
        %1167 = vmatprep.subr.mxu0 0.0
        %1168 = vmatpush1.msra.mxu0 0.0
        %1169 = vmatprep.mubr.f32.mxu0 0.0
        %1170 = vmatmul.mubr.f32.gmra.mrb[0].mxu0 %v1100
        %v1171 = vpop.f32.mrb[0].mxu0
        %v1172 = vadd.f32 0.0, %v1171
        %v1173 = vpop.f32.mrb[0].mxu0
        %1174 = vmatprep.mubr.f32.mxu0 0.0
        %1175 = vmatmul.mubr.f32.gmra.mrb[0].mxu0 %v1103
        %v1176 = vpop.f32.mrb[0].mxu0
        %v1177 = vadd.f32 0.0, %v1176
        %v1178 = vpop.f32.mrb[0].mxu0
        %1179 = vdwg.mxu0
        %v1180 = vadd.f32 %v891, %v1172
        %v1181 = vadd.f32 %v896, %v1177
        %1182 = vrot.lane.b32.xlu0 %v325, 104
        %v1183 = vpop.permute.xlu0 %1182
        %1184 = vrot.lane.b32.xlu0 %v330, 104
        %v1185 = vpop.permute.xlu0 %1184
        %1186 = vrot.lane.b32.xlu0 %v325, 72
        %v1187 = vpop.permute.xlu0 %1186
        %1188 = vrot.lane.b32.xlu0 %v330, 72
        %v1189 = vpop.permute.xlu0 %1188
        %v1190 = vsel %vm343, %v1183, 0
        %v1192 = vsel %vm343, %v1185, 0
        %v1194 = vsel %vm343, %v1187, 0
        %v1196 = vsel %vm343, %v1189, 0
        %1198 = vmatprep.subr.mxu0 0.0
        %1199 = vmatpush1.xpose.msra.mxu0 %v1194
        %1200 = vmatprep.subr.mxu0 0.0
        %1201 = vmatpush1.xpose.msra.mxu0 %v1196
        %1202 = vmatprep.subr.mxu0 0.0
        %1203 = vmatpush1.xpose.msra.mxu0 0.0
        %1204 = vmatprep.subr.mxu0 0.0
        %1205 = vmatpush1.xpose.msra.mxu0 0.0
        %1206 = vmatprep.subr.mxu0 0.0
        %1207 = vmatpush1.xpose.msra.mxu0 0.0
        %1208 = vmatprep.subr.mxu0 0.0
        %1209 = vmatpush1.xpose.msra.mxu0 0.0
        %1210 = vmatprep.subr.mxu0 0.0
        %1211 = vmatpush1.xpose.msra.mxu0 0.0
        %1212 = vmatprep.subr.mxu0 0.0
        %1213 = vmatpush1.xpose.msra.mxu0 0.0
        %1214 = vmatprep.subr.mxu0 0.0
        %1215 = vmatpush1.xpose.msra.mxu0 0.0
        %1216 = vmatprep.subr.mxu0 0.0
        %1217 = vmatpush1.xpose.msra.mxu0 0.0
        %1218 = vmatprep.subr.mxu0 0.0
        %1219 = vmatpush1.xpose.msra.mxu0 0.0
        %1220 = vmatprep.subr.mxu0 0.0
        %1221 = vmatpush1.xpose.msra.mxu0 0.0
        %1222 = vmatprep.subr.mxu0 0.0
        %1223 = vmatpush1.xpose.msra.mxu0 0.0
        %1224 = vmatprep.subr.mxu0 0.0
        %1225 = vmatpush1.xpose.msra.mxu0 0.0
        %1226 = vmatprep.subr.mxu0 0.0
        %1227 = vmatpush1.xpose.msra.mxu0 0.0
        %1228 = vmatprep.subr.mxu0 0.0
        %1229 = vmatpush1.xpose.msra.mxu0 0.0
        %1230 = vmatprep.subr.mxu0 0.0
        %1231 = vmatpush1.xpose.msra.mxu0 0.0
        %1232 = vmatprep.subr.mxu0 0.0
        %1233 = vmatpush1.xpose.msra.mxu0 0.0
        %1234 = vmatprep.subr.mxu0 0.0
        %1235 = vmatpush1.xpose.msra.mxu0 0.0
        %1236 = vmatprep.subr.mxu0 0.0
        %1237 = vmatpush1.xpose.msra.mxu0 0.0
        %1238 = vmatprep.subr.mxu0 0.0
        %1239 = vmatpush1.xpose.msra.mxu0 0.0
        %1240 = vmatprep.subr.mxu0 0.0
        %1241 = vmatpush1.xpose.msra.mxu0 0.0
        %1242 = vmatprep.subr.mxu0 0.0
        %1243 = vmatpush1.xpose.msra.mxu0 0.0
        %1244 = vmatprep.subr.mxu0 0.0
        %1245 = vmatpush1.xpose.msra.mxu0 0.0
        %1246 = vmatprep.subr.mxu0 0.0
        %1247 = vmatpush1.xpose.msra.mxu0 0.0
        %1248 = vmatprep.subr.mxu0 0.0
        %1249 = vmatpush1.xpose.msra.mxu0 0.0
        %1250 = vmatprep.subr.mxu0 0.0
        %1251 = vmatpush1.xpose.msra.mxu0 0.0
        %1252 = vmatprep.subr.mxu0 0.0
        %1253 = vmatpush1.xpose.msra.mxu0 0.0
        %1254 = vmatprep.subr.mxu0 0.0
        %1255 = vmatpush1.xpose.msra.mxu0 0.0
        %1256 = vmatprep.subr.mxu0 0.0
        %1257 = vmatpush1.xpose.msra.mxu0 0.0
        %1258 = vmatprep.subr.mxu0 0.0
        %1259 = vmatpush1.xpose.msra.mxu0 0.0
        %1260 = vmatprep.subr.mxu0 0.0
        %1261 = vmatpush1.xpose.msra.mxu0 0.0
        %1262 = vmatprep.mubr.f32.mxu0 0.0
        %1263 = vmatmul.mubr.f32.gmra.mrb[0].mxu0 %v1190
        %v1264 = vpop.f32.mrb[0].mxu0
        %v1265 = vadd.f32 0.0, %v1264
        %v1266 = vpop.f32.mrb[0].mxu0
        %1267 = vmatprep.mubr.f32.mxu0 0.0
        %1268 = vmatmul.mubr.f32.gmra.mrb[0].mxu0 %v1192
        %v1269 = vpop.f32.mrb[0].mxu0
        %v1270 = vadd.f32 0.0, %v1269
        %v1271 = vpop.f32.mrb[0].mxu0
        %1272 = vdwg.mxu0
        %v1273 = vsel %vm427, %v1265, -inf
        %1274 = vmax.xlane.f32.xlu0 %v1273
        %v1275 = vpop.xlane.xlu0 %1274
        %v1276 = vsel %vm427, %v1270, -inf
        %1277 = vmax.xlane.f32.xlu0 %v1276
        %v1278 = vpop.xlane.xlu0 %1277
        %v1279 = vsub.f32 %v1265, %v1275
        %v1280 = vsub.f32 %v1270, %v1278
        %v1281 = vmul.f32 %v1279, 1.442695
        %v1282 = vpow.pop %v1281
        %v1283 = vmul.f32 %v1280, 1.442695
        %v1284 = vpow.pop %v1283
        %v1285 = vsel %vm427, %v1282, 0.0
        %1286 = vadd.xlane.f32.xlu0 %v1285
        %v1287 = vpop.xlane.xlu0 %1286
        %v1288 = vsel %vm427, %v1284, 0.0
        %1289 = vadd.xlane.f32.xlu0 %v1288
        %v1290 = vpop.xlane.xlu0 %1289
        %1291 = vrot.lane.b32.xlu0 %v325, 40
        %v1292 = vpop.permute.xlu0 %1291
        %1293 = vrot.lane.b32.xlu0 %v330, 40
        %v1294 = vpop.permute.xlu0 %1293
        %v1298 = vsel %vm427, %v1282, 0
        %v1301 = vsel %vm427, %v1284, 0
        %1303 = vmatprep.subr.mxu0 0.0
        %1304 = vmatpush1.msra.mxu0 %v1292
        %1305 = vmatprep.subr.mxu0 0.0
        %1306 = vmatpush1.msra.mxu0 %v1294
        %1307 = vmatprep.subr.mxu0 0.0
        %1308 = vmatpush1.msra.mxu0 0.0
        %1309 = vmatprep.subr.mxu0 0.0
        %1310 = vmatpush1.msra.mxu0 0.0
        %1311 = vmatprep.subr.mxu0 0.0
        %1312 = vmatpush1.msra.mxu0 0.0
        %1313 = vmatprep.subr.mxu0 0.0
        %1314 = vmatpush1.msra.mxu0 0.0
        %1315 = vmatprep.subr.mxu0 0.0
        %1316 = vmatpush1.msra.mxu0 0.0
        %1317 = vmatprep.subr.mxu0 0.0
        %1318 = vmatpush1.msra.mxu0 0.0
        %1319 = vmatprep.subr.mxu0 0.0
        %1320 = vmatpush1.msra.mxu0 0.0
        %1321 = vmatprep.subr.mxu0 0.0
        %1322 = vmatpush1.msra.mxu0 0.0
        %1323 = vmatprep.subr.mxu0 0.0
        %1324 = vmatpush1.msra.mxu0 0.0
        %1325 = vmatprep.subr.mxu0 0.0
        %1326 = vmatpush1.msra.mxu0 0.0
        %1327 = vmatprep.subr.mxu0 0.0
        %1328 = vmatpush1.msra.mxu0 0.0
        %1329 = vmatprep.subr.mxu0 0.0
        %1330 = vmatpush1.msra.mxu0 0.0
        %1331 = vmatprep.subr.mxu0 0.0
        %1332 = vmatpush1.msra.mxu0 0.0
        %1333 = vmatprep.subr.mxu0 0.0
        %1334 = vmatpush1.msra.mxu0 0.0
        %1335 = vmatprep.subr.mxu0 0.0
        %1336 = vmatpush1.msra.mxu0 0.0
        %1337 = vmatprep.subr.mxu0 0.0
        %1338 = vmatpush1.msra.mxu0 0.0
        %1339 = vmatprep.subr.mxu0 0.0
        %1340 = vmatpush1.msra.mxu0 0.0
        %1341 = vmatprep.subr.mxu0 0.0
        %1342 = vmatpush1.msra.mxu0 0.0
        %1343 = vmatprep.subr.mxu0 0.0
        %1344 = vmatpush1.msra.mxu0 0.0
        %1345 = vmatprep.subr.mxu0 0.0
        %1346 = vmatpush1.msra.mxu0 0.0
        %1347 = vmatprep.subr.mxu0 0.0
        %1348 = vmatpush1.msra.mxu0 0.0
        %1349 = vmatprep.subr.mxu0 0.0
        %1350 = vmatpush1.msra.mxu0 0.0
        %1351 = vmatprep.subr.mxu0 0.0
        %1352 = vmatpush1.msra.mxu0 0.0
        %1353 = vmatprep.subr.mxu0 0.0
        %1354 = vmatpush1.msra.mxu0 0.0
        %1355 = vmatprep.subr.mxu0 0.0
        %1356 = vmatpush1.msra.mxu0 0.0
        %1357 = vmatprep.subr.mxu0 0.0
        %1358 = vmatpush1.msra.mxu0 0.0
        %1359 = vmatprep.subr.mxu0 0.0
        %1360 = vmatpush1.msra.mxu0 0.0
        %1361 = vmatprep.subr.mxu0 0.0
        %1362 = vmatpush1.msra.mxu0 0.0
        %1363 = vmatprep.subr.mxu0 0.0
        %1364 = vmatpush1.msra.mxu0 0.0
        %1365 = vmatprep.subr.mxu0 0.0
        %1366 = vmatpush1.msra.mxu0 0.0
        %1367 = vmatprep.mubr.f32.mxu0 0.0
        %1368 = vmatmul.mubr.f32.gmra.mrb[0].mxu0 %v1298
        %v1369 = vpop.f32.mrb[0].mxu0
        %v1370 = vadd.f32 0.0, %v1369
        %v1371 = vpop.f32.mrb[0].mxu0
        %1372 = vmatprep.mubr.f32.mxu0 0.0
        %1373 = vmatmul.mubr.f32.gmra.mrb[0].mxu0 %v1301
        %v1374 = vpop.f32.mrb[0].mxu0
        %v1375 = vadd.f32 0.0, %v1374
        %v1376 = vpop.f32.mrb[0].mxu0
        %1377 = vdwg.mxu0
        %v1378 = vrcp.pop %v1287
        %v1379 = vrcp.pop %v1290
        %v1380 = vmul.f32 %v1370, %v1378
        %v1381 = vmul.f32 %v1375, %v1379
        %v1383 = vsel %vm343, %v1380, 0
        %v1386 = vsel %vm343, %v1381, 0
        %1388 = vmatprep.subr.mxu0 0.0
        %1389 = vmatpush1.msra.mxu0 %v336
        %1390 = vmatprep.subr.mxu0 0.0
        %1391 = vmatpush1.msra.mxu0 0.0
        %1392 = vmatprep.subr.mxu0 0.0
        %1393 = vmatpush1.msra.mxu0 0.0
        %1394 = vmatprep.subr.mxu0 0.0
        %1395 = vmatpush1.msra.mxu0 0.0
        %1396 = vmatprep.subr.mxu0 0.0
        %1397 = vmatpush1.msra.mxu0 0.0
        %1398 = vmatprep.subr.mxu0 0.0
        %1399 = vmatpush1.msra.mxu0 0.0
        %1400 = vmatprep.subr.mxu0 0.0
        %1401 = vmatpush1.msra.mxu0 0.0
        %1402 = vmatprep.subr.mxu0 0.0
        %1403 = vmatpush1.msra.mxu0 0.0
        %1404 = vmatprep.subr.mxu0 0.0
        %1405 = vmatpush1.msra.mxu0 0.0
        %1406 = vmatprep.subr.mxu0 0.0
        %1407 = vmatpush1.msra.mxu0 0.0
        %1408 = vmatprep.subr.mxu0 0.0
        %1409 = vmatpush1.msra.mxu0 0.0
        %1410 = vmatprep.subr.mxu0 0.0
        %1411 = vmatpush1.msra.mxu0 0.0
        %1412 = vmatprep.subr.mxu0 0.0
        %1413 = vmatpush1.msra.mxu0 0.0
        %1414 = vmatprep.subr.mxu0 0.0
        %1415 = vmatpush1.msra.mxu0 0.0
        %1416 = vmatprep.subr.mxu0 0.0
        %1417 = vmatpush1.msra.mxu0 0.0
        %1418 = vmatprep.subr.mxu0 0.0
        %1419 = vmatpush1.msra.mxu0 0.0
        %1420 = vmatprep.subr.mxu0 0.0
        %1421 = vmatpush1.msra.mxu0 0.0
        %1422 = vmatprep.subr.mxu0 0.0
        %1423 = vmatpush1.msra.mxu0 0.0
        %1424 = vmatprep.subr.mxu0 0.0
        %1425 = vmatpush1.msra.mxu0 0.0
        %1426 = vmatprep.subr.mxu0 0.0
        %1427 = vmatpush1.msra.mxu0 0.0
        %1428 = vmatprep.subr.mxu0 0.0
        %1429 = vmatpush1.msra.mxu0 0.0
        %1430 = vmatprep.subr.mxu0 0.0
        %1431 = vmatpush1.msra.mxu0 0.0
        %1432 = vmatprep.subr.mxu0 0.0
        %1433 = vmatpush1.msra.mxu0 0.0
        %1434 = vmatprep.subr.mxu0 0.0
        %1435 = vmatpush1.msra.mxu0 0.0
        %1436 = vmatprep.subr.mxu0 0.0
        %1437 = vmatpush1.msra.mxu0 0.0
        %1438 = vmatprep.subr.mxu0 0.0
        %1439 = vmatpush1.msra.mxu0 0.0
        %1440 = vmatprep.subr.mxu0 0.0
        %1441 = vmatpush1.msra.mxu0 0.0
        %1442 = vmatprep.subr.mxu0 0.0
        %1443 = vmatpush1.msra.mxu0 0.0
        %1444 = vmatprep.subr.mxu0 0.0
        %1445 = vmatpush1.msra.mxu0 0.0
        %1446 = vmatprep.subr.mxu0 0.0
        %1447 = vmatpush1.msra.mxu0 0.0
        %1448 = vmatprep.subr.mxu0 0.0
        %1449 = vmatpush1.msra.mxu0 0.0
        %1450 = vmatprep.subr.mxu0 0.0
        %1451 = vmatpush1.msra.mxu0 0.0
        %1452 = vmatprep.mubr.f32.mxu0 0.0
        %1453 = vmatmul.mubr.f32.gmra.mrb[0].mxu0 %v1383
        %v1454 = vpop.f32.mrb[0].mxu0
        %v1455 = vadd.f32 0.0, %v1454
        %v1456 = vpop.f32.mrb[0].mxu0
        %1457 = vmatprep.mubr.f32.mxu0 0.0
        %1458 = vmatmul.mubr.f32.gmra.mrb[0].mxu0 %v1386
        %v1459 = vpop.f32.mrb[0].mxu0
        %v1460 = vadd.f32 0.0, %v1459
        %v1461 = vpop.f32.mrb[0].mxu0
        %1462 = vdwg.mxu0
        %v1463 = vadd.f32 %v1180, %v1455
        %v1464 = vadd.f32 %v1181, %v1460
        %v1465 = vld [vmem:[%s3] sm:$0x1]
        %v1467 = vlaneseq
        %v1468 = vshrl.u32 %v1467, 7
        %v1469 = vsub.s32 0, %v1468
        %v1470 = vrot.slane %v1465, %v1469
        %v1472 = vadd.f32 %v1463, %v1470
        %v1473 = vadd.f32 %v1464, %v1470
        %1474 = vst.msk [vmem:[%s244] sm:$0xff] %vm251, %v1472
        %1475 = vst.msk [vmem:[%s244 + $0x8] sm:$0xff] %vm251, %v1473
        %s1476 = sand.u32 %s119, 1
        %s1477 = scalar_lea.sflag [#allocation4], %s1476
        %s1478 = sand.u32 %s119, 1
        %s1479 = smul.addr %s1478, 16
        %s1480 = scalar_lea.vmem [#allocation8], %s1479
        // Predicated region
        $region49: #{tpu_custom_call.1} parent=35 // pred_check
          %p1481 = pneg %p129
        $region50: #{tpu_custom_call.1} parent=35 // pred_check_branch
          %1483 = sbr.rel (%p1481) target = $region52
        $region51: #{tpu_custom_call.1} parent=35 // pred_region
          %s1485 = ssub.s32 256, 256
          %1486 = vsyncadd %s1477, %s1485
          %s1487 = smul.addr %s22, 2
          %s1488 = smul.addr %s1487, 128
          %s1489 = scalar_lea.hbm %s4, %s1488
          %s1490 = sshll.u32 %s1480, 4
          %s1491 = int_to_ptr.vmem [resolvable:$true] %s1490
          %1496 = dma.vmem_to_hbm [thread:$0]  %s1491, 256, %s1489, %s1477, 128, 128, 8
        $region52: #{tpu_custom_call.1} parent=35 // pred_fallthru
          _
      $region36: #{tpu_custom_call.1} parent=5 // pred_fallthru
        _
      %p1497 = scmp.le.s32.totalorder 2, %s17
      // Predicated region
      $region53: #{tpu_custom_call.1} parent=5 // pred_check
        %p1498 = pneg %p1497
      $region54: #{tpu_custom_call.1} parent=5 // pred_check_branch
        %1500 = sbr.rel (%p1498) target = $region56
      $region55: #{tpu_custom_call.1} parent=5 // pred_region
        %s1501 = ssub.s32 %s17, 2
        // Predicated region
        $region57: #{tpu_custom_call.1} parent=55 // pred_check
          %p1502 = pneg %p135
        $region58: #{tpu_custom_call.1} parent=55 // pred_check_branch
          %1504 = sbr.rel (%p1502) target = $region60
        $region59: #{tpu_custom_call.1} parent=55 // pred_region
          %s1505 = sand.u32 %s120, 1
          %s1506 = scalar_lea.sflag [#allocation4], %s1505
          %s1507 = sand.u32 %s120, 1
          %s1508 = smul.addr %s1507, 16
          %s1509 = scalar_lea.vmem [#allocation8], %s1508
          %1510 = dma.done %s1506, 256
        $region60: #{tpu_custom_call.1} parent=55 // pred_fallthru
          _
      $region56: #{tpu_custom_call.1} parent=5 // pred_fallthru
        _
    $region6: #{tpu_custom_call.1} parent=1 // loop_footer
      %s21 = sadd.s32 1, %s17
    $region7: #{tpu_custom_call.1} parent=1 // loop_footer_branch
      %16 = sbr.rel target = $region3
    $region8: #{tpu_custom_call.1} parent=1 // loop_exit
      _
    %1511 = vsyncpa [#allocation3], 1
    %s1512 = scalar_lea.sflag [#allocation3], 1
    %1513 = vsyncpa %s1512, 1
    %1514 = vsyncpa [#allocation6], 1
    %1515 = vsyncpa [#allocation4], 1
    %s1516 = scalar_lea.sflag [#allocation4], 1
    %1517 = vsyncpa %s1516, 1

</llo_original>
